<compile_context>
chip_gen: v6e
topology: v6e:2x2x1
jax: 0.10.0
libtpu: 0.0.40
codegen_flags: <defaults>
</compile_context>

<pallas_src>
import functools

import jax
import jax.numpy as jnp
from jax.experimental import pallas as pl
from jax.experimental.pallas import tpu as pltpu


def _lstm_fc_kernel(x_ref, wih_ref, whh_ref, b_ref, wfc_ref, bfc_ref, out_ref,
                    *, seq_len, target_length, batch, hidden_size, input_size):
    """Whole-sequence LSTM + final Linear in a single kernel invocation.

    x_ref:   (T*B, I)   time-major flattened inputs
    wih_ref: (I, 4H)    input->gates weights (pre-transposed, gate order i,f,g,o)
    whh_ref: (H, 4H)    hidden->gates weights (pre-transposed)
    b_ref:   (1, 4H)    combined bias (b_ih + b_hh)
    wfc_ref: (H, O)     final Linear weight (pre-transposed)
    bfc_ref: (1, O)     final Linear bias
    out_ref: (TL*B, O)  fc(h_t) for the last target_length steps, time-major
    """
    T, TL, B, H, I = seq_len, target_length, batch, hidden_size, input_size

    # Hoist all weight/bias loads out of the time loop (loaded once).
    wih = wih_ref[...]        # (I, 4H)
    whh = whh_ref[...]        # (H, 4H)
    b = b_ref[...]            # (1, 4H)
    wfc = wfc_ref[...]        # (H, O)
    bfc = bfc_ref[...]        # (1, O)

    x2d = x_ref[...]          # (T*B, I)

    # Precompute the input contribution to the gates for ALL timesteps at once
    # (and fold in the bias), so the recurrent loop only carries h @ W_hh.
    if I == 1:
        gx_all = x2d * wih    # (T*B,1)*(1,4H) broadcast -> VPU, no K=1 MXU matmul
    else:
        gx_all = jnp.dot(x2d, wih, preferred_element_type=jnp.float32)
    gx_all = gx_all + b       # (T*B, 4H)

    h = jnp.zeros((B, H), jnp.float32)
    c = jnp.zeros((B, H), jnp.float32)
    h_last = []

    # Fully unrolled recurrence (T is small); everything stays in vregs.
    for t in range(T):
        gates = gx_all[t * B:(t + 1) * B] + jnp.dot(
            h, whh, preferred_element_type=jnp.float32)        # (B, 4H)
        # Full-width activations on the EUP, then static lane slices per gate.
        sg = jax.nn.sigmoid(gates)
        th = jnp.tanh(gates)
        i_g = sg[:, 0 * H:1 * H]
        f_g = sg[:, 1 * H:2 * H]
        g_g = th[:, 2 * H:3 * H]
        o_g = sg[:, 3 * H:4 * H]
        c = f_g * c + i_g * g_g
        h = o_g * jnp.tanh(c)
        if t >= T - TL:       # keep only the steps the final Linear consumes
            h_last.append(h)

    hs = jnp.concatenate(h_last, axis=0)                        # (TL*B, H)
    y = jnp.dot(hs, wfc, preferred_element_type=jnp.float32) + bfc
    out_ref[...] = y.astype(out_ref.dtype)                      # single store


def lstm_forward(x, params, *, hidden_size, target_length):
    """Pallas equivalent of MyLSTM.forward. x: (B, T, I) float32."""
    B, T, I = x.shape
    H = hidden_size
    TL = target_length
    O = params["w_fc"].shape[1]

    # Time-major, flattened to (T*B, I): one small VMEM-resident slab.
    x_tm = jnp.transpose(x, (1, 0, 2)).reshape(T * B, I)

    kernel = functools.partial(
        _lstm_fc_kernel, seq_len=T, target_length=TL, batch=B,
        hidden_size=H, input_size=I)

    out_flat = pl.pallas_call(
        kernel,
        out_shape=jax.ShapeDtypeStruct((TL * B, O), jnp.float32),
        grid_spec=pltpu.PrefetchScalarGridSpec(
            num_scalar_prefetch=0,
            grid=(1,),   # whole recurrence in one invocation
            in_specs=[
                pl.BlockSpec((T * B, I), lambda i: (0, 0)),      # x (time-major)
                pl.BlockSpec((I, 4 * H), lambda i: (0, 0)),      # W_ih^T
                pl.BlockSpec((H, 4 * H), lambda i: (0, 0)),      # W_hh^T
                pl.BlockSpec((1, 4 * H), lambda i: (0, 0)),      # bias (b_ih+b_hh)
                pl.BlockSpec((H, O), lambda i: (0, 0)),          # W_fc^T
                pl.BlockSpec((1, O), lambda i: (0, 0)),          # b_fc
            ],
            out_specs=pl.BlockSpec((TL * B, O), lambda i: (0, 0)),
        ),
        compiler_params=pltpu.CompilerParams(
            dimension_semantics=("arbitrary",)),
    )(x_tm, params["w_ih_t"], params["w_hh_t"], params["b"],
      params["w_fc"], params["b_fc"])

    # (TL*B, O) time-major rows -> (B, TL, O) batch_first like PyTorch.
    return jnp.transpose(out_flat.reshape(TL, B, O), (1, 0, 2))


def lstm_forward_ref(x, params, *, hidden_size, target_length):
    """Pure-JAX reference (matches PyTorch nn.LSTM gate math, zero init state)."""
    B, T, I = x.shape
    H = hidden_size

    def step(carry, x_t):
        h, c = carry
        gates = x_t @ params["w_ih_t"] + h @ params["w_hh_t"] + params["b"]
        i = jax.nn.sigmoid(gates[:, 0 * H:1 * H])
        f = jax.nn.sigmoid(gates[:, 1 * H:2 * H])
        g = jnp.tanh(gates[:, 2 * H:3 * H])
        o = jax.nn.sigmoid(gates[:, 3 * H:4 * H])
        c = f * c + i * g
        h = o * jnp.tanh(c)
        return (h, c), h

    h0 = jnp.zeros((B, H), jnp.float32)
    c0 = jnp.zeros((B, H), jnp.float32)
    _, hs = jax.lax.scan(step, (h0, c0), jnp.transpose(x, (1, 0, 2)))
    hs = jnp.transpose(hs, (1, 0, 2))  # (B, T, H)
    return hs[:, -target_length:, :] @ params["w_fc"] + params["b_fc"]


if __name__ == "__main__":
    # Small shapes consistent with the module: batch=2, seq=16, target=4,
    # input_size=1, hidden=32, output_size=1.
    B, T, TL, I, H, O = 2, 16, 4, 1, 32, 1

    key = jax.random.PRNGKey(0)
    k_wih, k_whh, k_b, k_wfc, k_bfc, k_x = jax.random.split(key, 6)
    bound = 1.0 / float(jnp.sqrt(H))  # PyTorch-style uniform(-1/sqrt(H), 1/sqrt(H))
    params = {
        # stored pre-transposed; gate order along last dim is (i, f, g, o) as in PyTorch
        "w_ih_t": jax.random.uniform(k_wih, (I, 4 * H), jnp.float32, -bound, bound),
        "w_hh_t": jax.random.uniform(k_whh, (H, 4 * H), jnp.float32, -bound, bound),
        "b":      jax.random.uniform(k_b, (1, 4 * H), jnp.float32, -bound, bound),  # b_ih + b_hh
        "w_fc":   jax.random.uniform(k_wfc, (H, O), jnp.float32, -bound, bound),
        "b_fc":   jax.random.uniform(k_bfc, (1, O), jnp.float32, -bound, bound),
    }
    x = jax.random.normal(k_x, (B, T, I), jnp.float32)

    out = lstm_forward(x, params, hidden_size=H, target_length=TL)
    out = jax.block_until_ready(out)

    ref = lstm_forward_ref(x, params, hidden_size=H, target_length=TL)
    assert out.shape == (B, TL, O), out.shape
    assert jnp.allclose(out, ref, atol=1e-4, rtol=1e-4), float(jnp.max(jnp.abs(out - ref)))

    print("KERNEL_OK")
</pallas_src>

<mosaic_0001>
module attributes {stable_mosaic.version = 11 : i64} {
  func.func @_lstm_fc_kernel(%arg0: i32, %arg1: memref<32x1xf32, #tpu.memory_space<vmem>>, %arg2: memref<1x128xf32, #tpu.memory_space<vmem>>, %arg3: memref<32x128xf32, #tpu.memory_space<vmem>>, %arg4: memref<1x128xf32, #tpu.memory_space<vmem>>, %arg5: memref<32x1xf32, #tpu.memory_space<vmem>>, %arg6: memref<1x1xf32, #tpu.memory_space<vmem>>, %arg7: memref<8x1xf32, #tpu.memory_space<vmem>>) attributes {dimension_semantics = [#tpu.dimension_semantics<arbitrary>], iteration_bounds = array<i64: 1>, scalar_prefetch = 0 : i64, scratch_operands = 0 : i64, tpu.core_type = #tpu.core_type<tc>, window_params = [{pipeline_mode = #tpu.pipeline_mode<synchronous>, transform_indices = @transform_0, window_bounds = array<i64: 32, 1>}, {pipeline_mode = #tpu.pipeline_mode<synchronous>, transform_indices = @transform_1, window_bounds = array<i64: 1, 128>}, {pipeline_mode = #tpu.pipeline_mode<synchronous>, transform_indices = @transform_2, window_bounds = array<i64: 32, 128>}, {pipeline_mode = #tpu.pipeline_mode<synchronous>, transform_indices = @transform_3, window_bounds = array<i64: 1, 128>}, {pipeline_mode = #tpu.pipeline_mode<synchronous>, transform_indices = @transform_4, window_bounds = array<i64: 32, 1>}, {pipeline_mode = #tpu.pipeline_mode<synchronous>, transform_indices = @transform_5, window_bounds = array<i64: 1, 1>}, {pipeline_mode = #tpu.pipeline_mode<synchronous>, transform_indices = @transform_6, window_bounds = array<i64: 8, 1>}]} {
    %c0 = arith.constant 0 : index
    %c0_0 = arith.constant 0 : index
    %0 = vector.load %arg2[%c0, %c0_0] : memref<1x128xf32, #tpu.memory_space<vmem>>, vector<1x128xf32>
    %c0_1 = arith.constant 0 : index
    %c0_2 = arith.constant 0 : index
    %1 = vector.load %arg3[%c0_1, %c0_2] : memref<32x128xf32, #tpu.memory_space<vmem>>, vector<32x128xf32>
    %c0_3 = arith.constant 0 : index
    %c0_4 = arith.constant 0 : index
    %2 = vector.load %arg4[%c0_3, %c0_4] : memref<1x128xf32, #tpu.memory_space<vmem>>, vector<1x128xf32>
    %c0_5 = arith.constant 0 : index
    %c0_6 = arith.constant 0 : index
    %3 = vector.load %arg5[%c0_5, %c0_6] : memref<32x1xf32, #tpu.memory_space<vmem>>, vector<32x1xf32>
    %c0_7 = arith.constant 0 : index
    %c0_8 = arith.constant 0 : index
    %4 = vector.load %arg6[%c0_7, %c0_8] : memref<1x1xf32, #tpu.memory_space<vmem>>, vector<1x1xf32>
    %c0_9 = arith.constant 0 : index
    %c0_10 = arith.constant 0 : index
    %5 = vector.load %arg1[%c0_9, %c0_10] : memref<32x1xf32, #tpu.memory_space<vmem>>, vector<32x1xf32>
    %6 = vector.broadcast %5 : vector<32x1xf32> to vector<32x128xf32>
    %7 = vector.broadcast %0 : vector<1x128xf32> to vector<32x128xf32>
    %8 = arith.mulf %6, %7 : vector<32x128xf32>
    %9 = vector.broadcast %2 : vector<1x128xf32> to vector<32x128xf32>
    %10 = arith.addf %8, %9 : vector<32x128xf32>
    %cst = arith.constant 0.000000e+00 : f32
    %11 = vector.broadcast %cst : f32 to vector<2x32xf32>
    %cst_11 = arith.constant 0.000000e+00 : f32
    %12 = vector.broadcast %cst_11 : f32 to vector<2x32xf32>
    %13 = vector.extract_strided_slice %10 {offsets = [0, 0], sizes = [2, 128], strides = [1, 1]} : vector<32x128xf32> to vector<2x128xf32>
    %cst_12 = arith.constant dense<0.000000e+00> : vector<2x128xf32>
    %14 = tpu.matmul %11, %1, %cst_12 {dimension_numbers = #tpu.dot_dimension_numbers<[1], [0], [0], [1], [0, 0, 1, 1], [], []>} : vector<2x32xf32>, vector<32x128xf32>, vector<2x128xf32> -> vector<2x128xf32>
    %15 = arith.addf %13, %14 : vector<2x128xf32>
    %16 = arith.negf %15 : vector<2x128xf32>
    %17 = math.exp %16 : vector<2x128xf32>
    %cst_13 = arith.constant 1.000000e+00 : f32
    %18 = vector.broadcast %cst_13 : f32 to vector<2x128xf32>
    %19 = arith.addf %18, %17 : vector<2x128xf32>
    %20 = arith.divf %18, %19 : vector<2x128xf32>
    %21 = math.tanh %15 : vector<2x128xf32>
    %22 = vector.extract_strided_slice %20 {offsets = [0, 0], sizes = [2, 32], strides = [1, 1]} : vector<2x128xf32> to vector<2x32xf32>
    %23 = vector.extract_strided_slice %20 {offsets = [0, 32], sizes = [2, 32], strides = [1, 1]} : vector<2x128xf32> to vector<2x32xf32>
    %24 = vector.extract_strided_slice %21 {offsets = [0, 64], sizes = [2, 32], strides = [1, 1]} : vector<2x128xf32> to vector<2x32xf32>
    %25 = vector.extract_strided_slice %20 {offsets = [0, 96], sizes = [2, 32], strides = [1, 1]} : vector<2x128xf32> to vector<2x32xf32>
    %26 = arith.mulf %23, %12 : vector<2x32xf32>
    %27 = arith.mulf %22, %24 : vector<2x32xf32>
    %28 = arith.addf %26, %27 : vector<2x32xf32>
    %29 = math.tanh %28 : vector<2x32xf32>
    %30 = arith.mulf %25, %29 : vector<2x32xf32>
    %31 = vector.extract_strided_slice %10 {offsets = [2, 0], sizes = [2, 128], strides = [1, 1]} : vector<32x128xf32> to vector<2x128xf32>
    %cst_14 = arith.constant dense<0.000000e+00> : vector<2x128xf32>
    %32 = tpu.matmul %30, %1, %cst_14 {dimension_numbers = #tpu.dot_dimension_numbers<[1], [0], [0], [1], [0, 0, 1, 1], [], []>} : vector<2x32xf32>, vector<32x128xf32>, vector<2x128xf32> -> vector<2x128xf32>
    %33 = arith.addf %31, %32 : vector<2x128xf32>
    %34 = arith.negf %33 : vector<2x128xf32>
    %35 = math.exp %34 : vector<2x128xf32>
    %cst_15 = arith.constant 1.000000e+00 : f32
    %36 = vector.broadcast %cst_15 : f32 to vector<2x128xf32>
    %37 = arith.addf %36, %35 : vector<2x128xf32>
    %38 = arith.divf %36, %37 : vector<2x128xf32>
    %39 = math.tanh %33 : vector<2x128xf32>
    %40 = vector.extract_strided_slice %38 {offsets = [0, 0], sizes = [2, 32], strides = [1, 1]} : vector<2x128xf32> to vector<2x32xf32>
    %41 = vector.extract_strided_slice %38 {offsets = [0, 32], sizes = [2, 32], strides = [1, 1]} : vector<2x128xf32> to vector<2x32xf32>
    %42 = vector.extract_strided_slice %39 {offsets = [0, 64], sizes = [2, 32], strides = [1, 1]} : vector<2x128xf32> to vector<2x32xf32>
    %43 = vector.extract_strided_slice %38 {offsets = [0, 96], sizes = [2, 32], strides = [1, 1]} : vector<2x128xf32> to vector<2x32xf32>
    %44 = arith.mulf %41, %28 : vector<2x32xf32>
    %45 = arith.mulf %40, %42 : vector<2x32xf32>
    %46 = arith.addf %44, %45 : vector<2x32xf32>
    %47 = math.tanh %46 : vector<2x32xf32>
    %48 = arith.mulf %43, %47 : vector<2x32xf32>
    %49 = vector.extract_strided_slice %10 {offsets = [4, 0], sizes = [2, 128], strides = [1, 1]} : vector<32x128xf32> to vector<2x128xf32>
    %cst_16 = arith.constant dense<0.000000e+00> : vector<2x128xf32>
    %50 = tpu.matmul %48, %1, %cst_16 {dimension_numbers = #tpu.dot_dimension_numbers<[1], [0], [0], [1], [0, 0, 1, 1], [], []>} : vector<2x32xf32>, vector<32x128xf32>, vector<2x128xf32> -> vector<2x128xf32>
    %51 = arith.addf %49, %50 : vector<2x128xf32>
    %52 = arith.negf %51 : vector<2x128xf32>
    %53 = math.exp %52 : vector<2x128xf32>
    %cst_17 = arith.constant 1.000000e+00 : f32
    %54 = vector.broadcast %cst_17 : f32 to vector<2x128xf32>
    %55 = arith.addf %54, %53 : vector<2x128xf32>
    %56 = arith.divf %54, %55 : vector<2x128xf32>
    %57 = math.tanh %51 : vector<2x128xf32>
    %58 = vector.extract_strided_slice %56 {offsets = [0, 0], sizes = [2, 32], strides = [1, 1]} : vector<2x128xf32> to vector<2x32xf32>
    %59 = vector.extract_strided_slice %56 {offsets = [0, 32], sizes = [2, 32], strides = [1, 1]} : vector<2x128xf32> to vector<2x32xf32>
    %60 = vector.extract_strided_slice %57 {offsets = [0, 64], sizes = [2, 32], strides = [1, 1]} : vector<2x128xf32> to vector<2x32xf32>
    %61 = vector.extract_strided_slice %56 {offsets = [0, 96], sizes = [2, 32], strides = [1, 1]} : vector<2x128xf32> to vector<2x32xf32>
    %62 = arith.mulf %59, %46 : vector<2x32xf32>
    %63 = arith.mulf %58, %60 : vector<2x32xf32>
    %64 = arith.addf %62, %63 : vector<2x32xf32>
    %65 = math.tanh %64 : vector<2x32xf32>
    %66 = arith.mulf %61, %65 : vector<2x32xf32>
    %67 = vector.extract_strided_slice %10 {offsets = [6, 0], sizes = [2, 128], strides = [1, 1]} : vector<32x128xf32> to vector<2x128xf32>
    %cst_18 = arith.constant dense<0.000000e+00> : vector<2x128xf32>
    %68 = tpu.matmul %66, %1, %cst_18 {dimension_numbers = #tpu.dot_dimension_numbers<[1], [0], [0], [1], [0, 0, 1, 1], [], []>} : vector<2x32xf32>, vector<32x128xf32>, vector<2x128xf32> -> vector<2x128xf32>
    %69 = arith.addf %67, %68 : vector<2x128xf32>
    %70 = arith.negf %69 : vector<2x128xf32>
    %71 = math.exp %70 : vector<2x128xf32>
    %cst_19 = arith.constant 1.000000e+00 : f32
    %72 = vector.broadcast %cst_19 : f32 to vector<2x128xf32>
    %73 = arith.addf %72, %71 : vector<2x128xf32>
    %74 = arith.divf %72, %73 : vector<2x128xf32>
    %75 = math.tanh %69 : vector<2x128xf32>
    %76 = vector.extract_strided_slice %74 {offsets = [0, 0], sizes = [2, 32], strides = [1, 1]} : vector<2x128xf32> to vector<2x32xf32>
    %77 = vector.extract_strided_slice %74 {offsets = [0, 32], sizes = [2, 32], strides = [1, 1]} : vector<2x128xf32> to vector<2x32xf32>
    %78 = vector.extract_strided_slice %75 {offsets = [0, 64], sizes = [2, 32], strides = [1, 1]} : vector<2x128xf32> to vector<2x32xf32>
    %79 = vector.extract_strided_slice %74 {offsets = [0, 96], sizes = [2, 32], strides = [1, 1]} : vector<2x128xf32> to vector<2x32xf32>
    %80 = arith.mulf %77, %64 : vector<2x32xf32>
    %81 = arith.mulf %76, %78 : vector<2x32xf32>
    %82 = arith.addf %80, %81 : vector<2x32xf32>
    %83 = math.tanh %82 : vector<2x32xf32>
    %84 = arith.mulf %79, %83 : vector<2x32xf32>
    %85 = vector.extract_strided_slice %10 {offsets = [8, 0], sizes = [2, 128], strides = [1, 1]} : vector<32x128xf32> to vector<2x128xf32>
    %cst_20 = arith.constant dense<0.000000e+00> : vector<2x128xf32>
    %86 = tpu.matmul %84, %1, %cst_20 {dimension_numbers = #tpu.dot_dimension_numbers<[1], [0], [0], [1], [0, 0, 1, 1], [], []>} : vector<2x32xf32>, vector<32x128xf32>, vector<2x128xf32> -> vector<2x128xf32>
    %87 = arith.addf %85, %86 : vector<2x128xf32>
    %88 = arith.negf %87 : vector<2x128xf32>
    %89 = math.exp %88 : vector<2x128xf32>
    %cst_21 = arith.constant 1.000000e+00 : f32
    %90 = vector.broadcast %cst_21 : f32 to vector<2x128xf32>
    %91 = arith.addf %90, %89 : vector<2x128xf32>
    %92 = arith.divf %90, %91 : vector<2x128xf32>
    %93 = math.tanh %87 : vector<2x128xf32>
    %94 = vector.extract_strided_slice %92 {offsets = [0, 0], sizes = [2, 32], strides = [1, 1]} : vector<2x128xf32> to vector<2x32xf32>
    %95 = vector.extract_strided_slice %92 {offsets = [0, 32], sizes = [2, 32], strides = [1, 1]} : vector<2x128xf32> to vector<2x32xf32>
    %96 = vector.extract_strided_slice %93 {offsets = [0, 64], sizes = [2, 32], strides = [1, 1]} : vector<2x128xf32> to vector<2x32xf32>
    %97 = vector.extract_strided_slice %92 {offsets = [0, 96], sizes = [2, 32], strides = [1, 1]} : vector<2x128xf32> to vector<2x32xf32>
    %98 = arith.mulf %95, %82 : vector<2x32xf32>
    %99 = arith.mulf %94, %96 : vector<2x32xf32>
    %100 = arith.addf %98, %99 : vector<2x32xf32>
    %101 = math.tanh %100 : vector<2x32xf32>
    %102 = arith.mulf %97, %101 : vector<2x32xf32>
    %103 = vector.extract_strided_slice %10 {offsets = [10, 0], sizes = [2, 128], strides = [1, 1]} : vector<32x128xf32> to vector<2x128xf32>
    %cst_22 = arith.constant dense<0.000000e+00> : vector<2x128xf32>
    %104 = tpu.matmul %102, %1, %cst_22 {dimension_numbers = #tpu.dot_dimension_numbers<[1], [0], [0], [1], [0, 0, 1, 1], [], []>} : vector<2x32xf32>, vector<32x128xf32>, vector<2x128xf32> -> vector<2x128xf32>
    %105 = arith.addf %103, %104 : vector<2x128xf32>
    %106 = arith.negf %105 : vector<2x128xf32>
    %107 = math.exp %106 : vector<2x128xf32>
    %cst_23 = arith.constant 1.000000e+00 : f32
    %108 = vector.broadcast %cst_23 : f32 to vector<2x128xf32>
    %109 = arith.addf %108, %107 : vector<2x128xf32>
    %110 = arith.divf %108, %109 : vector<2x128xf32>
    %111 = math.tanh %105 : vector<2x128xf32>
    %112 = vector.extract_strided_slice %110 {offsets = [0, 0], sizes = [2, 32], strides = [1, 1]} : vector<2x128xf32> to vector<2x32xf32>
    %113 = vector.extract_strided_slice %110 {offsets = [0, 32], sizes = [2, 32], strides = [1, 1]} : vector<2x128xf32> to vector<2x32xf32>
    %114 = vector.extract_strided_slice %111 {offsets = [0, 64], sizes = [2, 32], strides = [1, 1]} : vector<2x128xf32> to vector<2x32xf32>
    %115 = vector.extract_strided_slice %110 {offsets = [0, 96], sizes = [2, 32], strides = [1, 1]} : vector<2x128xf32> to vector<2x32xf32>
    %116 = arith.mulf %113, %100 : vector<2x32xf32>
    %117 = arith.mulf %112, %114 : vector<2x32xf32>
    %118 = arith.addf %116, %117 : vector<2x32xf32>
    %119 = math.tanh %118 : vector<2x32xf32>
    %120 = arith.mulf %115, %119 : vector<2x32xf32>
    %121 = vector.extract_strided_slice %10 {offsets = [12, 0], sizes = [2, 128], strides = [1, 1]} : vector<32x128xf32> to vector<2x128xf32>
    %cst_24 = arith.constant dense<0.000000e+00> : vector<2x128xf32>
    %122 = tpu.matmul %120, %1, %cst_24 {dimension_numbers = #tpu.dot_dimension_numbers<[1], [0], [0], [1], [0, 0, 1, 1], [], []>} : vector<2x32xf32>, vector<32x128xf32>, vector<2x128xf32> -> vector<2x128xf32>
    %123 = arith.addf %121, %122 : vector<2x128xf32>
    %124 = arith.negf %123 : vector<2x128xf32>
    %125 = math.exp %124 : vector<2x128xf32>
    %cst_25 = arith.constant 1.000000e+00 : f32
    %126 = vector.broadcast %cst_25 : f32 to vector<2x128xf32>
    %127 = arith.addf %126, %125 : vector<2x128xf32>
    %128 = arith.divf %126, %127 : vector<2x128xf32>
    %129 = math.tanh %123 : vector<2x128xf32>
    %130 = vector.extract_strided_slice %128 {offsets = [0, 0], sizes = [2, 32], strides = [1, 1]} : vector<2x128xf32> to vector<2x32xf32>
    %131 = vector.extract_strided_slice %128 {offsets = [0, 32], sizes = [2, 32], strides = [1, 1]} : vector<2x128xf32> to vector<2x32xf32>
    %132 = vector.extract_strided_slice %129 {offsets = [0, 64], sizes = [2, 32], strides = [1, 1]} : vector<2x128xf32> to vector<2x32xf32>
    %133 = vector.extract_strided_slice %128 {offsets = [0, 96], sizes = [2, 32], strides = [1, 1]} : vector<2x128xf32> to vector<2x32xf32>
    %134 = arith.mulf %131, %118 : vector<2x32xf32>
    %135 = arith.mulf %130, %132 : vector<2x32xf32>
    %136 = arith.addf %134, %135 : vector<2x32xf32>
    %137 = math.tanh %136 : vector<2x32xf32>
    %138 = arith.mulf %133, %137 : vector<2x32xf32>
    %139 = vector.extract_strided_slice %10 {offsets = [14, 0], sizes = [2, 128], strides = [1, 1]} : vector<32x128xf32> to vector<2x128xf32>
    %cst_26 = arith.constant dense<0.000000e+00> : vector<2x128xf32>
    %140 = tpu.matmul %138, %1, %cst_26 {dimension_numbers = #tpu.dot_dimension_numbers<[1], [0], [0], [1], [0, 0, 1, 1], [], []>} : vector<2x32xf32>, vector<32x128xf32>, vector<2x128xf32> -> vector<2x128xf32>
    %141 = arith.addf %139, %140 : vector<2x128xf32>
    %142 = arith.negf %141 : vector<2x128xf32>
    %143 = math.exp %142 : vector<2x128xf32>
    %cst_27 = arith.constant 1.000000e+00 : f32
    %144 = vector.broadcast %cst_27 : f32 to vector<2x128xf32>
    %145 = arith.addf %144, %143 : vector<2x128xf32>
    %146 = arith.divf %144, %145 : vector<2x128xf32>
    %147 = math.tanh %141 : vector<2x128xf32>
    %148 = vector.extract_strided_slice %146 {offsets = [0, 0], sizes = [2, 32], strides = [1, 1]} : vector<2x128xf32> to vector<2x32xf32>
    %149 = vector.extract_strided_slice %146 {offsets = [0, 32], sizes = [2, 32], strides = [1, 1]} : vector<2x128xf32> to vector<2x32xf32>
    %150 = vector.extract_strided_slice %147 {offsets = [0, 64], sizes = [2, 32], strides = [1, 1]} : vector<2x128xf32> to vector<2x32xf32>
    %151 = vector.extract_strided_slice %146 {offsets = [0, 96], sizes = [2, 32], strides = [1, 1]} : vector<2x128xf32> to vector<2x32xf32>
    %152 = arith.mulf %149, %136 : vector<2x32xf32>
    %153 = arith.mulf %148, %150 : vector<2x32xf32>
    %154 = arith.addf %152, %153 : vector<2x32xf32>
    %155 = math.tanh %154 : vector<2x32xf32>
    %156 = arith.mulf %151, %155 : vector<2x32xf32>
    %157 = vector.extract_strided_slice %10 {offsets = [16, 0], sizes = [2, 128], strides = [1, 1]} : vector<32x128xf32> to vector<2x128xf32>
    %cst_28 = arith.constant dense<0.000000e+00> : vector<2x128xf32>
    %158 = tpu.matmul %156, %1, %cst_28 {dimension_numbers = #tpu.dot_dimension_numbers<[1], [0], [0], [1], [0, 0, 1, 1], [], []>} : vector<2x32xf32>, vector<32x128xf32>, vector<2x128xf32> -> vector<2x128xf32>
    %159 = arith.addf %157, %158 : vector<2x128xf32>
    %160 = arith.negf %159 : vector<2x128xf32>
    %161 = math.exp %160 : vector<2x128xf32>
    %cst_29 = arith.constant 1.000000e+00 : f32
    %162 = vector.broadcast %cst_29 : f32 to vector<2x128xf32>
    %163 = arith.addf %162, %161 : vector<2x128xf32>
    %164 = arith.divf %162, %163 : vector<2x128xf32>
    %165 = math.tanh %159 : vector<2x128xf32>
    %166 = vector.extract_strided_slice %164 {offsets = [0, 0], sizes = [2, 32], strides = [1, 1]} : vector<2x128xf32> to vector<2x32xf32>
    %167 = vector.extract_strided_slice %164 {offsets = [0, 32], sizes = [2, 32], strides = [1, 1]} : vector<2x128xf32> to vector<2x32xf32>
    %168 = vector.extract_strided_slice %165 {offsets = [0, 64], sizes = [2, 32], strides = [1, 1]} : vector<2x128xf32> to vector<2x32xf32>
    %169 = vector.extract_strided_slice %164 {offsets = [0, 96], sizes = [2, 32], strides = [1, 1]} : vector<2x128xf32> to vector<2x32xf32>
    %170 = arith.mulf %167, %154 : vector<2x32xf32>
    %171 = arith.mulf %166, %168 : vector<2x32xf32>
    %172 = arith.addf %170, %171 : vector<2x32xf32>
    %173 = math.tanh %172 : vector<2x32xf32>
    %174 = arith.mulf %169, %173 : vector<2x32xf32>
    %175 = vector.extract_strided_slice %10 {offsets = [18, 0], sizes = [2, 128], strides = [1, 1]} : vector<32x128xf32> to vector<2x128xf32>
    %cst_30 = arith.constant dense<0.000000e+00> : vector<2x128xf32>
    %176 = tpu.matmul %174, %1, %cst_30 {dimension_numbers = #tpu.dot_dimension_numbers<[1], [0], [0], [1], [0, 0, 1, 1], [], []>} : vector<2x32xf32>, vector<32x128xf32>, vector<2x128xf32> -> vector<2x128xf32>
    %177 = arith.addf %175, %176 : vector<2x128xf32>
    %178 = arith.negf %177 : vector<2x128xf32>
    %179 = math.exp %178 : vector<2x128xf32>
    %cst_31 = arith.constant 1.000000e+00 : f32
    %180 = vector.broadcast %cst_31 : f32 to vector<2x128xf32>
    %181 = arith.addf %180, %179 : vector<2x128xf32>
    %182 = arith.divf %180, %181 : vector<2x128xf32>
    %183 = math.tanh %177 : vector<2x128xf32>
    %184 = vector.extract_strided_slice %182 {offsets = [0, 0], sizes = [2, 32], strides = [1, 1]} : vector<2x128xf32> to vector<2x32xf32>
    %185 = vector.extract_strided_slice %182 {offsets = [0, 32], sizes = [2, 32], strides = [1, 1]} : vector<2x128xf32> to vector<2x32xf32>
    %186 = vector.extract_strided_slice %183 {offsets = [0, 64], sizes = [2, 32], strides = [1, 1]} : vector<2x128xf32> to vector<2x32xf32>
    %187 = vector.extract_strided_slice %182 {offsets = [0, 96], sizes = [2, 32], strides = [1, 1]} : vector<2x128xf32> to vector<2x32xf32>
    %188 = arith.mulf %185, %172 : vector<2x32xf32>
    %189 = arith.mulf %184, %186 : vector<2x32xf32>
    %190 = arith.addf %188, %189 : vector<2x32xf32>
    %191 = math.tanh %190 : vector<2x32xf32>
    %192 = arith.mulf %187, %191 : vector<2x32xf32>
    %193 = vector.extract_strided_slice %10 {offsets = [20, 0], sizes = [2, 128], strides = [1, 1]} : vector<32x128xf32> to vector<2x128xf32>
    %cst_32 = arith.constant dense<0.000000e+00> : vector<2x128xf32>
    %194 = tpu.matmul %192, %1, %cst_32 {dimension_numbers = #tpu.dot_dimension_numbers<[1], [0], [0], [1], [0, 0, 1, 1], [], []>} : vector<2x32xf32>, vector<32x128xf32>, vector<2x128xf32> -> vector<2x128xf32>
    %195 = arith.addf %193, %194 : vector<2x128xf32>
    %196 = arith.negf %195 : vector<2x128xf32>
    %197 = math.exp %196 : vector<2x128xf32>
    %cst_33 = arith.constant 1.000000e+00 : f32
    %198 = vector.broadcast %cst_33 : f32 to vector<2x128xf32>
    %199 = arith.addf %198, %197 : vector<2x128xf32>
    %200 = arith.divf %198, %199 : vector<2x128xf32>
    %201 = math.tanh %195 : vector<2x128xf32>
    %202 = vector.extract_strided_slice %200 {offsets = [0, 0], sizes = [2, 32], strides = [1, 1]} : vector<2x128xf32> to vector<2x32xf32>
    %203 = vector.extract_strided_slice %200 {offsets = [0, 32], sizes = [2, 32], strides = [1, 1]} : vector<2x128xf32> to vector<2x32xf32>
    %204 = vector.extract_strided_slice %201 {offsets = [0, 64], sizes = [2, 32], strides = [1, 1]} : vector<2x128xf32> to vector<2x32xf32>
    %205 = vector.extract_strided_slice %200 {offsets = [0, 96], sizes = [2, 32], strides = [1, 1]} : vector<2x128xf32> to vector<2x32xf32>
    %206 = arith.mulf %203, %190 : vector<2x32xf32>
    %207 = arith.mulf %202, %204 : vector<2x32xf32>
    %208 = arith.addf %206, %207 : vector<2x32xf32>
    %209 = math.tanh %208 : vector<2x32xf32>
    %210 = arith.mulf %205, %209 : vector<2x32xf32>
    %211 = vector.extract_strided_slice %10 {offsets = [22, 0], sizes = [2, 128], strides = [1, 1]} : vector<32x128xf32> to vector<2x128xf32>
    %cst_34 = arith.constant dense<0.000000e+00> : vector<2x128xf32>
    %212 = tpu.matmul %210, %1, %cst_34 {dimension_numbers = #tpu.dot_dimension_numbers<[1], [0], [0], [1], [0, 0, 1, 1], [], []>} : vector<2x32xf32>, vector<32x128xf32>, vector<2x128xf32> -> vector<2x128xf32>
    %213 = arith.addf %211, %212 : vector<2x128xf32>
    %214 = arith.negf %213 : vector<2x128xf32>
    %215 = math.exp %214 : vector<2x128xf32>
    %cst_35 = arith.constant 1.000000e+00 : f32
    %216 = vector.broadcast %cst_35 : f32 to vector<2x128xf32>
    %217 = arith.addf %216, %215 : vector<2x128xf32>
    %218 = arith.divf %216, %217 : vector<2x128xf32>
    %219 = math.tanh %213 : vector<2x128xf32>
    %220 = vector.extract_strided_slice %218 {offsets = [0, 0], sizes = [2, 32], strides = [1, 1]} : vector<2x128xf32> to vector<2x32xf32>
    %221 = vector.extract_strided_slice %218 {offsets = [0, 32], sizes = [2, 32], strides = [1, 1]} : vector<2x128xf32> to vector<2x32xf32>
    %222 = vector.extract_strided_slice %219 {offsets = [0, 64], sizes = [2, 32], strides = [1, 1]} : vector<2x128xf32> to vector<2x32xf32>
    %223 = vector.extract_strided_slice %218 {offsets = [0, 96], sizes = [2, 32], strides = [1, 1]} : vector<2x128xf32> to vector<2x32xf32>
    %224 = arith.mulf %221, %208 : vector<2x32xf32>
    %225 = arith.mulf %220, %222 : vector<2x32xf32>
    %226 = arith.addf %224, %225 : vector<2x32xf32>
    %227 = math.tanh %226 : vector<2x32xf32>
    %228 = arith.mulf %223, %227 : vector<2x32xf32>
    %229 = vector.extract_strided_slice %10 {offsets = [24, 0], sizes = [2, 128], strides = [1, 1]} : vector<32x128xf32> to vector<2x128xf32>
    %cst_36 = arith.constant dense<0.000000e+00> : vector<2x128xf32>
    %230 = tpu.matmul %228, %1, %cst_36 {dimension_numbers = #tpu.dot_dimension_numbers<[1], [0], [0], [1], [0, 0, 1, 1], [], []>} : vector<2x32xf32>, vector<32x128xf32>, vector<2x128xf32> -> vector<2x128xf32>
    %231 = arith.addf %229, %230 : vector<2x128xf32>
    %232 = arith.negf %231 : vector<2x128xf32>
    %233 = math.exp %232 : vector<2x128xf32>
    %cst_37 = arith.constant 1.000000e+00 : f32
    %234 = vector.broadcast %cst_37 : f32 to vector<2x128xf32>
    %235 = arith.addf %234, %233 : vector<2x128xf32>
    %236 = arith.divf %234, %235 : vector<2x128xf32>
    %237 = math.tanh %231 : vector<2x128xf32>
    %238 = vector.extract_strided_slice %236 {offsets = [0, 0], sizes = [2, 32], strides = [1, 1]} : vector<2x128xf32> to vector<2x32xf32>
    %239 = vector.extract_strided_slice %236 {offsets = [0, 32], sizes = [2, 32], strides = [1, 1]} : vector<2x128xf32> to vector<2x32xf32>
    %240 = vector.extract_strided_slice %237 {offsets = [0, 64], sizes = [2, 32], strides = [1, 1]} : vector<2x128xf32> to vector<2x32xf32>
    %241 = vector.extract_strided_slice %236 {offsets = [0, 96], sizes = [2, 32], strides = [1, 1]} : vector<2x128xf32> to vector<2x32xf32>
    %242 = arith.mulf %239, %226 : vector<2x32xf32>
    %243 = arith.mulf %238, %240 : vector<2x32xf32>
    %244 = arith.addf %242, %243 : vector<2x32xf32>
    %245 = math.tanh %244 : vector<2x32xf32>
    %246 = arith.mulf %241, %245 : vector<2x32xf32>
    %247 = vector.extract_strided_slice %10 {offsets = [26, 0], sizes = [2, 128], strides = [1, 1]} : vector<32x128xf32> to vector<2x128xf32>
    %cst_38 = arith.constant dense<0.000000e+00> : vector<2x128xf32>
    %248 = tpu.matmul %246, %1, %cst_38 {dimension_numbers = #tpu.dot_dimension_numbers<[1], [0], [0], [1], [0, 0, 1, 1], [], []>} : vector<2x32xf32>, vector<32x128xf32>, vector<2x128xf32> -> vector<2x128xf32>
    %249 = arith.addf %247, %248 : vector<2x128xf32>
    %250 = arith.negf %249 : vector<2x128xf32>
    %251 = math.exp %250 : vector<2x128xf32>
    %cst_39 = arith.constant 1.000000e+00 : f32
    %252 = vector.broadcast %cst_39 : f32 to vector<2x128xf32>
    %253 = arith.addf %252, %251 : vector<2x128xf32>
    %254 = arith.divf %252, %253 : vector<2x128xf32>
    %255 = math.tanh %249 : vector<2x128xf32>
    %256 = vector.extract_strided_slice %254 {offsets = [0, 0], sizes = [2, 32], strides = [1, 1]} : vector<2x128xf32> to vector<2x32xf32>
    %257 = vector.extract_strided_slice %254 {offsets = [0, 32], sizes = [2, 32], strides = [1, 1]} : vector<2x128xf32> to vector<2x32xf32>
    %258 = vector.extract_strided_slice %255 {offsets = [0, 64], sizes = [2, 32], strides = [1, 1]} : vector<2x128xf32> to vector<2x32xf32>
    %259 = vector.extract_strided_slice %254 {offsets = [0, 96], sizes = [2, 32], strides = [1, 1]} : vector<2x128xf32> to vector<2x32xf32>
    %260 = arith.mulf %257, %244 : vector<2x32xf32>
    %261 = arith.mulf %256, %258 : vector<2x32xf32>
    %262 = arith.addf %260, %261 : vector<2x32xf32>
    %263 = math.tanh %262 : vector<2x32xf32>
    %264 = arith.mulf %259, %263 : vector<2x32xf32>
    %265 = vector.extract_strided_slice %10 {offsets = [28, 0], sizes = [2, 128], strides = [1, 1]} : vector<32x128xf32> to vector<2x128xf32>
    %cst_40 = arith.constant dense<0.000000e+00> : vector<2x128xf32>
    %266 = tpu.matmul %264, %1, %cst_40 {dimension_numbers = #tpu.dot_dimension_numbers<[1], [0], [0], [1], [0, 0, 1, 1], [], []>} : vector<2x32xf32>, vector<32x128xf32>, vector<2x128xf32> -> vector<2x128xf32>
    %267 = arith.addf %265, %266 : vector<2x128xf32>
    %268 = arith.negf %267 : vector<2x128xf32>
    %269 = math.exp %268 : vector<2x128xf32>
    %cst_41 = arith.constant 1.000000e+00 : f32
    %270 = vector.broadcast %cst_41 : f32 to vector<2x128xf32>
    %271 = arith.addf %270, %269 : vector<2x128xf32>
    %272 = arith.divf %270, %271 : vector<2x128xf32>
    %273 = math.tanh %267 : vector<2x128xf32>
    %274 = vector.extract_strided_slice %272 {offsets = [0, 0], sizes = [2, 32], strides = [1, 1]} : vector<2x128xf32> to vector<2x32xf32>
    %275 = vector.extract_strided_slice %272 {offsets = [0, 32], sizes = [2, 32], strides = [1, 1]} : vector<2x128xf32> to vector<2x32xf32>
    %276 = vector.extract_strided_slice %273 {offsets = [0, 64], sizes = [2, 32], strides = [1, 1]} : vector<2x128xf32> to vector<2x32xf32>
    %277 = vector.extract_strided_slice %272 {offsets = [0, 96], sizes = [2, 32], strides = [1, 1]} : vector<2x128xf32> to vector<2x32xf32>
    %278 = arith.mulf %275, %262 : vector<2x32xf32>
    %279 = arith.mulf %274, %276 : vector<2x32xf32>
    %280 = arith.addf %278, %279 : vector<2x32xf32>
    %281 = math.tanh %280 : vector<2x32xf32>
    %282 = arith.mulf %277, %281 : vector<2x32xf32>
    %283 = vector.extract_strided_slice %10 {offsets = [30, 0], sizes = [2, 128], strides = [1, 1]} : vector<32x128xf32> to vector<2x128xf32>
    %cst_42 = arith.constant dense<0.000000e+00> : vector<2x128xf32>
    %284 = tpu.matmul %282, %1, %cst_42 {dimension_numbers = #tpu.dot_dimension_numbers<[1], [0], [0], [1], [0, 0, 1, 1], [], []>} : vector<2x32xf32>, vector<32x128xf32>, vector<2x128xf32> -> vector<2x128xf32>
    %285 = arith.addf %283, %284 : vector<2x128xf32>
    %286 = arith.negf %285 : vector<2x128xf32>
    %287 = math.exp %286 : vector<2x128xf32>
    %cst_43 = arith.constant 1.000000e+00 : f32
    %288 = vector.broadcast %cst_43 : f32 to vector<2x128xf32>
    %289 = arith.addf %288, %287 : vector<2x128xf32>
    %290 = arith.divf %288, %289 : vector<2x128xf32>
    %291 = math.tanh %285 : vector<2x128xf32>
    %292 = vector.extract_strided_slice %290 {offsets = [0, 0], sizes = [2, 32], strides = [1, 1]} : vector<2x128xf32> to vector<2x32xf32>
    %293 = vector.extract_strided_slice %290 {offsets = [0, 32], sizes = [2, 32], strides = [1, 1]} : vector<2x128xf32> to vector<2x32xf32>
    %294 = vector.extract_strided_slice %291 {offsets = [0, 64], sizes = [2, 32], strides = [1, 1]} : vector<2x128xf32> to vector<2x32xf32>
    %295 = vector.extract_strided_slice %290 {offsets = [0, 96], sizes = [2, 32], strides = [1, 1]} : vector<2x128xf32> to vector<2x32xf32>
    %296 = arith.mulf %293, %280 : vector<2x32xf32>
    %297 = arith.mulf %292, %294 : vector<2x32xf32>
    %298 = arith.addf %296, %297 : vector<2x32xf32>
    %299 = math.tanh %298 : vector<2x32xf32>
    %300 = arith.mulf %295, %299 : vector<2x32xf32>
    %301 = tpu.concatenate %246, %264, %282, %300 in 0 : vector<2x32xf32>, vector<2x32xf32>, vector<2x32xf32>, vector<2x32xf32> -> vector<8x32xf32>
    %cst_44 = arith.constant dense<0.000000e+00> : vector<8x1xf32>
    %302 = tpu.matmul %301, %3, %cst_44 {dimension_numbers = #tpu.dot_dimension_numbers<[1], [0], [0], [1], [0, 0, 1, 1], [], []>} : vector<8x32xf32>, vector<32x1xf32>, vector<8x1xf32> -> vector<8x1xf32>
    %303 = vector.broadcast %4 : vector<1x1xf32> to vector<8x1xf32>
    %304 = arith.addf %302, %303 : vector<8x1xf32>
    %c0_45 = arith.constant 0 : index
    %c0_46 = arith.constant 0 : index
    %305 = vector.load %arg7[%c0_45, %c0_46] : memref<8x1xf32, #tpu.memory_space<vmem>>, vector<8x1xf32>
    tpu.vector_store %arg7[%c0_45, %c0_46], %304 {strides = array<i32>} : memref<8x1xf32, #tpu.memory_space<vmem>>, vector<8x1xf32>,
    return
  }
  func.func @transform_0(%arg0: i32) -> (i32, i32) {
    %c0_i32 = arith.constant 0 : i32
    %c0_i32_0 = arith.constant 0 : i32
    %c0_i32_1 = arith.constant 0 : i32
    return %c0_i32, %c0_i32_0 : i32, i32
  }
  func.func @transform_1(%arg0: i32) -> (i32, i32) {
    %c0_i32 = arith.constant 0 : i32
    %c0_i32_0 = arith.constant 0 : i32
    %c0_i32_1 = arith.constant 0 : i32
    return %c0_i32, %c0_i32_0 : i32, i32
  }
  func.func @transform_2(%arg0: i32) -> (i32, i32) {
    %c0_i32 = arith.constant 0 : i32
    %c0_i32_0 = arith.constant 0 : i32
    %c0_i32_1 = arith.constant 0 : i32
    return %c0_i32, %c0_i32_0 : i32, i32
  }
  func.func @transform_3(%arg0: i32) -> (i32, i32) {
    %c0_i32 = arith.constant 0 : i32
    %c0_i32_0 = arith.constant 0 : i32
    %c0_i32_1 = arith.constant 0 : i32
    return %c0_i32, %c0_i32_0 : i32, i32
  }
  func.func @transform_4(%arg0: i32) -> (i32, i32) {
    %c0_i32 = arith.constant 0 : i32
    %c0_i32_0 = arith.constant 0 : i32
    %c0_i32_1 = arith.constant 0 : i32
    return %c0_i32, %c0_i32_0 : i32, i32
  }
  func.func @transform_5(%arg0: i32) -> (i32, i32) {
    %c0_i32 = arith.constant 0 : i32
    %c0_i32_0 = arith.constant 0 : i32
    %c0_i32_1 = arith.constant 0 : i32
    return %c0_i32, %c0_i32_0 : i32, i32
  }
  func.func @transform_6(%arg0: i32) -> (i32, i32) {
    %c0_i32 = arith.constant 0 : i32
    %c0_i32_0 = arith.constant 0 : i32
    %c0_i32_1 = arith.constant 0 : i32
    return %c0_i32, %c0_i32_0 : i32, i32
  }
}

</mosaic_0001>

<llo_original>
// kernel: tpu_custom_call.1
$region0: #{tpu_custom_call.1}
  #allocation0 [shape = 'u32[]', space=smem, size = 0x4, offset = 0x4, fixed_abs, tag = 'smem constant byte address 0x4 - core index']
  #allocation1 [shape = 'u32[144,128]{1,0:T(1,128)}', space=vmem, size = 0x12000, scoped, tag = 'internal scratch']
  #allocation2 [shape = 'f32[1,1]{1,0:T(1,128)S(1)}', space=vmem, size = 0x200, scoped, tag = 'scoped memory for tpu_custom_call.1']
  %s0 = inlined_call_operand.vmem [shape: f32[32,1], index: 0, kind: input, shape index: {}]
  %s1 = inlined_call_operand.vmem [shape: f32[1,128], index: 1, kind: input, shape index: {}]
  %s2 = inlined_call_operand.vmem [shape: f32[32,128], index: 2, kind: input, shape index: {}]
  %s3 = inlined_call_operand.vmem [shape: f32[1,128], index: 3, kind: input, shape index: {}]
  %s4 = inlined_call_operand.vmem [shape: f32[32,1], index: 4, kind: input, shape index: {}]
  %s5 = inlined_call_operand.<no memory space> [shape: f32[1,1], index: 5, kind: input, shape index: {}]
  %s6 = inlined_call_operand.vmem [shape: f32[8,1], index: 6, kind: output, shape index: {}]
  %s7 = sld [smem:[#allocation0]]
  $region34: #{tpu_custom_call.1} parent=0
    _
  %s9 = ssub.s32 1, %s7
  %s10 = scalar_select 0, %s9, %s7
  %v11 = vstv %s5
  %12 = vst [vmem:[#allocation2] sm:$0x1] %v11
  // Predicated region
  $region2: #{tpu_custom_call.1} parent=0 // pred_check
    _
  $region3: #{tpu_custom_call.1} parent=0 // pred_check_branch
    %14 = sbr.rel (0) target = $region5
  $region4: #{tpu_custom_call.1} parent=0 // pred_region
    _
  $region5: #{tpu_custom_call.1} parent=0 // pred_fallthru
    _
  // Predicated region
  $region6: #{tpu_custom_call.1} parent=0 // pred_check
    _
  $region7: #{tpu_custom_call.1} parent=0 // pred_check_branch
    %16 = sbr.rel (0) target = $region9
  $region8: #{tpu_custom_call.1} parent=0 // pred_region
    _
  $region9: #{tpu_custom_call.1} parent=0 // pred_fallthru
    _
  // Predicated region
  $region10: #{tpu_custom_call.1} parent=0 // pred_check
    _
  $region11: #{tpu_custom_call.1} parent=0 // pred_check_branch
    %18 = sbr.rel (0) target = $region13
  $region12: #{tpu_custom_call.1} parent=0 // pred_region
    _
  $region13: #{tpu_custom_call.1} parent=0 // pred_fallthru
    _
  // Predicated region
  $region14: #{tpu_custom_call.1} parent=0 // pred_check
    _
  $region15: #{tpu_custom_call.1} parent=0 // pred_check_branch
    %20 = sbr.rel (0) target = $region17
  $region16: #{tpu_custom_call.1} parent=0 // pred_region
    _
  $region17: #{tpu_custom_call.1} parent=0 // pred_fallthru
    _
  // Predicated region
  $region18: #{tpu_custom_call.1} parent=0 // pred_check
    _
  $region19: #{tpu_custom_call.1} parent=0 // pred_check_branch
    %22 = sbr.rel (0) target = $region21
  $region20: #{tpu_custom_call.1} parent=0 // pred_region
    _
  $region21: #{tpu_custom_call.1} parent=0 // pred_fallthru
    _
  // Predicated region
  $region22: #{tpu_custom_call.1} parent=0 // pred_check
    _
  $region23: #{tpu_custom_call.1} parent=0 // pred_check_branch
    %24 = sbr.rel (0) target = $region25
  $region24: #{tpu_custom_call.1} parent=0 // pred_region
    _
  $region25: #{tpu_custom_call.1} parent=0 // pred_fallthru
    _
  %v25 = vld [vmem:[%s1] sm:$0x1]
  %v26 = vld [vmem:[%s2] sm:$0xff]
  %v27 = vld [vmem:[%s2 + $0x8] sm:$0xff]
  %v28 = vld [vmem:[%s2 + $0x10] sm:$0xff]
  %v29 = vld [vmem:[%s2 + $0x18] sm:$0xff]
  %v30 = vld [vmem:[%s3] sm:$0x1]
  %v31 = vld [vmem:[%s4] sm:$0xff]
  %v32 = vld [vmem:[%s4 + $0x8] sm:$0xff]
  %v33 = vld [vmem:[%s4 + $0x10] sm:$0xff]
  %v34 = vld [vmem:[%s4 + $0x18] sm:$0xff]
  %v35 = vld [vmem:[#allocation2] sm:$0x1]
  %v36 = vld [vmem:[%s0] sm:$0xff]
  %v37 = vld [vmem:[%s0 + $0x8] sm:$0xff]
  %v38 = vld [vmem:[%s0 + $0x10] sm:$0xff]
  %v39 = vld [vmem:[%s0 + $0x18] sm:$0xff]
  %41 = vset.pattern.permute.xlu0 0
  %42 = vperm.xlu0 %41, %v36
  %v43 = vpop.permute.xlu0 %42
  %46 = vset.pattern.permute.xlu0 0
  %47 = vperm.xlu0 %46, %v37
  %v48 = vpop.permute.xlu0 %47
  %51 = vset.pattern.permute.xlu0 0
  %52 = vperm.xlu0 %51, %v38
  %v53 = vpop.permute.xlu0 %52
  %56 = vset.pattern.permute.xlu0 0
  %57 = vperm.xlu0 %56, %v39
  %v58 = vpop.permute.xlu0 %57
  %v61 = vlaneseq
  %v62 = vshrl.u32 %v61, 7
  %v63 = vsub.s32 0, %v62
  %v64 = vrot.slane %v25, %v63
  %v66 = vmul.f32 %v43, %v64
  %v67 = vmul.f32 %v48, %v64
  %v68 = vmul.f32 %v53, %v64
  %v69 = vmul.f32 %v58, %v64
  %v71 = vlaneseq
  %v72 = vshrl.u32 %v71, 7
  %v73 = vsub.s32 0, %v72
  %v74 = vrot.slane %v30, %v73
  %v76 = vadd.f32 %v66, %v74
  %v77 = vadd.f32 %v67, %v74
  %v78 = vadd.f32 %v68, %v74
  %v79 = vadd.f32 %v69, %v74
  %vm80 = vcmask 261120
  %v82 = vsel %vm80, 0.0, 0
  %84 = vmatprep.subr.mxu0 0.0
  %85 = vmatpush1.msra.mxu0 0.0
  %86 = vmatprep.subr.mxu0 0.0
  %87 = vmatpush1.msra.mxu0 0.0
  %88 = vmatprep.subr.mxu0 0.0
  %89 = vmatpush1.msra.mxu0 0.0
  %90 = vmatprep.subr.mxu0 0.0
  %91 = vmatpush1.msra.mxu0 0.0
  %92 = vmatprep.subr.mxu0 0.0
  %93 = vmatpush1.msra.mxu0 0.0
  %94 = vmatprep.subr.mxu0 0.0
  %95 = vmatpush1.msra.mxu0 0.0
  %96 = vmatprep.subr.mxu0 0.0
  %97 = vmatpush1.msra.mxu0 0.0
  %98 = vmatprep.subr.mxu0 0.0
  %99 = vmatpush1.msra.mxu0 0.0
  %100 = vmatprep.subr.mxu0 0.0
  %101 = vmatpush1.msra.mxu0 0.0
  %102 = vmatprep.subr.mxu0 0.0
  %103 = vmatpush1.msra.mxu0 0.0
  %104 = vmatprep.subr.mxu0 0.0
  %105 = vmatpush1.msra.mxu0 0.0
  %106 = vmatprep.subr.mxu0 0.0
  %107 = vmatpush1.msra.mxu0 0.0
  %108 = vmatprep.subr.mxu0 0.0
  %109 = vmatpush1.msra.mxu0 %v29
  %110 = vmatprep.subr.mxu0 0.0
  %111 = vmatpush1.msra.mxu0 %v28
  %112 = vmatprep.subr.mxu0 0.0
  %113 = vmatpush1.msra.mxu0 %v27
  %114 = vmatprep.subr.mxu0 0.0
  %115 = vmatpush1.msra.mxu0 %v26
  %116 = vmatprep.subr.mxu0 0.0
  %117 = vmatpush2.msra.mxu0 0.0
  %118 = vmatprep.subr.mxu0 0.0
  %119 = vmatpush2.msra.mxu0 0.0
  %120 = vmatprep.subr.mxu0 0.0
  %121 = vmatpush2.msra.mxu0 0.0
  %122 = vmatprep.subr.mxu0 0.0
  %123 = vmatpush2.msra.mxu0 0.0
  %124 = vmatprep.subr.mxu0 0.0
  %125 = vmatpush2.msra.mxu0 0.0
  %126 = vmatprep.subr.mxu0 0.0
  %127 = vmatpush2.msra.mxu0 0.0
  %128 = vmatprep.subr.mxu0 0.0
  %129 = vmatpush2.msra.mxu0 0.0
  %130 = vmatprep.subr.mxu0 0.0
  %131 = vmatpush2.msra.mxu0 0.0
  %132 = vmatprep.subr.mxu0 0.0
  %133 = vmatpush2.msra.mxu0 0.0
  %134 = vmatprep.subr.mxu0 0.0
  %135 = vmatpush2.msra.mxu0 0.0
  %136 = vmatprep.subr.mxu0 0.0
  %137 = vmatpush2.msra.mxu0 0.0
  %138 = vmatprep.subr.mxu0 0.0
  %139 = vmatpush2.msra.mxu0 0.0
  %140 = vmatprep.subr.mxu0 0.0
  %141 = vmatpush2.msra.mxu0 0.0
  %142 = vmatprep.subr.mxu0 0.0
  %143 = vmatpush2.msra.mxu0 0.0
  %144 = vmatprep.subr.mxu0 0.0
  %145 = vmatpush2.msra.mxu0 0.0
  %146 = vmatprep.subr.mxu0 0.0
  %147 = vmatpush2.msra.mxu0 0.0
  %148 = vmatprep.mubr.f32.mxu0 0.0
  %149 = vmatmul.mubr.f32.gmra.mxu0 %v82
  %v150 = vpop.f32.mrf.mxu0
  %v151 = vadd.f32 0.0, %v150
  %v152 = vpop.f32.mrf.mxu0
  %153 = vdwg.mxu0
  %v154 = vadd.f32 %v76, %v151
  %v155 = vxor.u32 %v154, 2147483648
  %v156 = vmul.f32 %v155, 1.442695
  %v157 = vpow.pop %v156
  %v158 = vadd.f32 %v157, 1.0
  %v159 = vrcp.pop %v158
  %v160 = vmul.f32 1.0, %v159
  %v161 = vtanh.pop %v154
  %v162 = vmul.f32 %v160, 0.0
  %164 = vrot.lane.b32.xlu0 %v161, 64
  %v165 = vpop.permute.xlu0 %164
  %v167 = vmul.f32 %v160, %v165
  %169 = vrot.lane.b32.xlu0 %v167, 32
  %v170 = vpop.permute.xlu0 %169
  %v172 = vadd.f32 %v162, %v170
  %v173 = vtanh.pop %v172
  %175 = vrot.lane.b32.xlu0 %v173, 64
  %v176 = vpop.permute.xlu0 %175
  %v178 = vmul.f32 %v160, %v176
  %180 = vrot.lane.b32.xlu0 %v178, 32
  %v181 = vpop.permute.xlu0 %180
  %v182 = vsel %vm80, %v181, 0
  %184 = vmatprep.subr.mxu0 0.0
  %185 = vmatpush1.msra.mxu0 0.0
  %186 = vmatprep.subr.mxu0 0.0
  %187 = vmatpush1.msra.mxu0 0.0
  %188 = vmatprep.subr.mxu0 0.0
  %189 = vmatpush1.msra.mxu0 0.0
  %190 = vmatprep.subr.mxu0 0.0
  %191 = vmatpush1.msra.mxu0 0.0
  %192 = vmatprep.subr.mxu0 0.0
  %193 = vmatpush1.msra.mxu0 0.0
  %194 = vmatprep.subr.mxu0 0.0
  %195 = vmatpush1.msra.mxu0 0.0
  %196 = vmatprep.subr.mxu0 0.0
  %197 = vmatpush1.msra.mxu0 0.0
  %198 = vmatprep.subr.mxu0 0.0
  %199 = vmatpush1.msra.mxu0 0.0
  %200 = vmatprep.subr.mxu0 0.0
  %201 = vmatpush1.msra.mxu0 0.0
  %202 = vmatprep.subr.mxu0 0.0
  %203 = vmatpush1.msra.mxu0 0.0
  %204 = vmatprep.subr.mxu0 0.0
  %205 = vmatpush1.msra.mxu0 0.0
  %206 = vmatprep.subr.mxu0 0.0
  %207 = vmatpush1.msra.mxu0 0.0
  %208 = vmatprep.subr.mxu0 0.0
  %209 = vmatpush1.msra.mxu0 %v29
  %210 = vmatprep.subr.mxu0 0.0
  %211 = vmatpush1.msra.mxu0 %v28
  %212 = vmatprep.subr.mxu0 0.0
  %213 = vmatpush1.msra.mxu0 %v27
  %214 = vmatprep.subr.mxu0 0.0
  %215 = vmatpush1.msra.mxu0 %v26
  %216 = vmatprep.subr.mxu0 0.0
  %217 = vmatpush2.msra.mxu0 0.0
  %218 = vmatprep.subr.mxu0 0.0
  %219 = vmatpush2.msra.mxu0 0.0
  %220 = vmatprep.subr.mxu0 0.0
  %221 = vmatpush2.msra.mxu0 0.0
  %222 = vmatprep.subr.mxu0 0.0
  %223 = vmatpush2.msra.mxu0 0.0
  %224 = vmatprep.subr.mxu0 0.0
  %225 = vmatpush2.msra.mxu0 0.0
  %226 = vmatprep.subr.mxu0 0.0
  %227 = vmatpush2.msra.mxu0 0.0
  %228 = vmatprep.subr.mxu0 0.0
  %229 = vmatpush2.msra.mxu0 0.0
  %230 = vmatprep.subr.mxu0 0.0
  %231 = vmatpush2.msra.mxu0 0.0
  %232 = vmatprep.subr.mxu0 0.0
  %233 = vmatpush2.msra.mxu0 0.0
  %234 = vmatprep.subr.mxu0 0.0
  %235 = vmatpush2.msra.mxu0 0.0
  %236 = vmatprep.subr.mxu0 0.0
  %237 = vmatpush2.msra.mxu0 0.0
  %238 = vmatprep.subr.mxu0 0.0
  %239 = vmatpush2.msra.mxu0 0.0
  %240 = vmatprep.subr.mxu0 0.0
  %241 = vmatpush2.msra.mxu0 0.0
  %242 = vmatprep.subr.mxu0 0.0
  %243 = vmatpush2.msra.mxu0 0.0
  %244 = vmatprep.subr.mxu0 0.0
  %245 = vmatpush2.msra.mxu0 0.0
  %246 = vmatprep.subr.mxu0 0.0
  %247 = vmatpush2.msra.mxu0 0.0
  %248 = vmatprep.mubr.f32.mxu0 0.0
  %249 = vmatmul.mubr.f32.gmra.mxu0 %v182
  %v250 = vpop.f32.mrf.mxu0
  %v251 = vadd.f32 0.0, %v250
  %v252 = vpop.f32.mrf.mxu0
  %253 = vdwg.mxu0
  %v255 = vrot.slane %v251, 6
  %v257 = vadd.f32 %v76, %v255
  %v258 = vxor.u32 %v257, 2147483648
  %v259 = vmul.f32 %v258, 1.442695
  %v260 = vpow.pop %v259
  %v261 = vadd.f32 %v260, 1.0
  %v262 = vrcp.pop %v261
  %v263 = vmul.f32 1.0, %v262
  %v264 = vtanh.pop %v257
  %v266 = vrot.slane %v172, 6
  %v268 = vmul.f32 %v263, %v266
  %270 = vrot.lane.b32.xlu0 %v264, 64
  %v271 = vpop.permute.xlu0 %270
  %v273 = vmul.f32 %v263, %v271
  %275 = vrot.lane.b32.xlu0 %v273, 32
  %v276 = vpop.permute.xlu0 %275
  %v278 = vadd.f32 %v268, %v276
  %v279 = vtanh.pop %v278
  %281 = vrot.lane.b32.xlu0 %v279, 64
  %v282 = vpop.permute.xlu0 %281
  %v284 = vmul.f32 %v263, %v282
  %v286 = vrot.slane %v284, 2
  %287 = vrot.lane.b32.xlu0 %v286, 32
  %v288 = vpop.permute.xlu0 %287
  %v289 = vsel %vm80, %v288, 0
  %291 = vmatprep.subr.mxu0 0.0
  %292 = vmatpush1.msra.mxu0 0.0
  %293 = vmatprep.subr.mxu0 0.0
  %294 = vmatpush1.msra.mxu0 0.0
  %295 = vmatprep.subr.mxu0 0.0
  %296 = vmatpush1.msra.mxu0 0.0
  %297 = vmatprep.subr.mxu0 0.0
  %298 = vmatpush1.msra.mxu0 0.0
  %299 = vmatprep.subr.mxu0 0.0
  %300 = vmatpush1.msra.mxu0 0.0
  %301 = vmatprep.subr.mxu0 0.0
  %302 = vmatpush1.msra.mxu0 0.0
  %303 = vmatprep.subr.mxu0 0.0
  %304 = vmatpush1.msra.mxu0 0.0
  %305 = vmatprep.subr.mxu0 0.0
  %306 = vmatpush1.msra.mxu0 0.0
  %307 = vmatprep.subr.mxu0 0.0
  %308 = vmatpush1.msra.mxu0 0.0
  %309 = vmatprep.subr.mxu0 0.0
  %310 = vmatpush1.msra.mxu0 0.0
  %311 = vmatprep.subr.mxu0 0.0
  %312 = vmatpush1.msra.mxu0 0.0
  %313 = vmatprep.subr.mxu0 0.0
  %314 = vmatpush1.msra.mxu0 0.0
  %315 = vmatprep.subr.mxu0 0.0
  %316 = vmatpush1.msra.mxu0 %v29
  %317 = vmatprep.subr.mxu0 0.0
  %318 = vmatpush1.msra.mxu0 %v28
  %319 = vmatprep.subr.mxu0 0.0
  %320 = vmatpush1.msra.mxu0 %v27
  %321 = vmatprep.subr.mxu0 0.0
  %322 = vmatpush1.msra.mxu0 %v26
  %323 = vmatprep.subr.mxu0 0.0
  %324 = vmatpush2.msra.mxu0 0.0
  %325 = vmatprep.subr.mxu0 0.0
  %326 = vmatpush2.msra.mxu0 0.0
  %327 = vmatprep.subr.mxu0 0.0
  %328 = vmatpush2.msra.mxu0 0.0
  %329 = vmatprep.subr.mxu0 0.0
  %330 = vmatpush2.msra.mxu0 0.0
  %331 = vmatprep.subr.mxu0 0.0
  %332 = vmatpush2.msra.mxu0 0.0
  %333 = vmatprep.subr.mxu0 0.0
  %334 = vmatpush2.msra.mxu0 0.0
  %335 = vmatprep.subr.mxu0 0.0
  %336 = vmatpush2.msra.mxu0 0.0
  %337 = vmatprep.subr.mxu0 0.0
  %338 = vmatpush2.msra.mxu0 0.0
  %339 = vmatprep.subr.mxu0 0.0
  %340 = vmatpush2.msra.mxu0 0.0
  %341 = vmatprep.subr.mxu0 0.0
  %342 = vmatpush2.msra.mxu0 0.0
  %343 = vmatprep.subr.mxu0 0.0
  %344 = vmatpush2.msra.mxu0 0.0
  %345 = vmatprep.subr.mxu0 0.0
  %346 = vmatpush2.msra.mxu0 0.0
  %347 = vmatprep.subr.mxu0 0.0
  %348 = vmatpush2.msra.mxu0 0.0
  %349 = vmatprep.subr.mxu0 0.0
  %350 = vmatpush2.msra.mxu0 0.0
  %351 = vmatprep.subr.mxu0 0.0
  %352 = vmatpush2.msra.mxu0 0.0
  %353 = vmatprep.subr.mxu0 0.0
  %354 = vmatpush2.msra.mxu0 0.0
  %355 = vmatprep.mubr.f32.mxu0 0.0
  %356 = vmatmul.mubr.f32.gmra.mxu0 %v289
  %v357 = vpop.f32.mrf.mxu0
  %v358 = vadd.f32 0.0, %v357
  %v359 = vpop.f32.mrf.mxu0
  %360 = vdwg.mxu0
  %v362 = vrot.slane %v358, 4
  %v364 = vadd.f32 %v76, %v362
  %v365 = vxor.u32 %v364, 2147483648
  %v366 = vmul.f32 %v365, 1.442695
  %v367 = vpow.pop %v366
  %v368 = vadd.f32 %v367, 1.0
  %v369 = vrcp.pop %v368
  %v370 = vmul.f32 1.0, %v369
  %v371 = vtanh.pop %v364
  %v373 = vrot.slane %v278, 6
  %v375 = vmul.f32 %v370, %v373
  %377 = vrot.lane.b32.xlu0 %v371, 64
  %v378 = vpop.permute.xlu0 %377
  %v380 = vmul.f32 %v370, %v378
  %382 = vrot.lane.b32.xlu0 %v380, 32
  %v383 = vpop.permute.xlu0 %382
  %v385 = vadd.f32 %v375, %v383
  %v386 = vtanh.pop %v385
  %388 = vrot.lane.b32.xlu0 %v386, 64
  %v389 = vpop.permute.xlu0 %388
  %v391 = vmul.f32 %v370, %v389
  %v393 = vrot.slane %v391, 4
  %394 = vrot.lane.b32.xlu0 %v393, 32
  %v395 = vpop.permute.xlu0 %394
  %v396 = vsel %vm80, %v395, 0
  %398 = vmatprep.subr.mxu0 0.0
  %399 = vmatpush1.msra.mxu0 0.0
  %400 = vmatprep.subr.mxu0 0.0
  %401 = vmatpush1.msra.mxu0 0.0
  %402 = vmatprep.subr.mxu0 0.0
  %403 = vmatpush1.msra.mxu0 0.0
  %404 = vmatprep.subr.mxu0 0.0
  %405 = vmatpush1.msra.mxu0 0.0
  %406 = vmatprep.subr.mxu0 0.0
  %407 = vmatpush1.msra.mxu0 0.0
  %408 = vmatprep.subr.mxu0 0.0
  %409 = vmatpush1.msra.mxu0 0.0
  %410 = vmatprep.subr.mxu0 0.0
  %411 = vmatpush1.msra.mxu0 0.0
  %412 = vmatprep.subr.mxu0 0.0
  %413 = vmatpush1.msra.mxu0 0.0
  %414 = vmatprep.subr.mxu0 0.0
  %415 = vmatpush1.msra.mxu0 0.0
  %416 = vmatprep.subr.mxu0 0.0
  %417 = vmatpush1.msra.mxu0 0.0
  %418 = vmatprep.subr.mxu0 0.0
  %419 = vmatpush1.msra.mxu0 0.0
  %420 = vmatprep.subr.mxu0 0.0
  %421 = vmatpush1.msra.mxu0 0.0
  %422 = vmatprep.subr.mxu0 0.0
  %423 = vmatpush1.msra.mxu0 %v29
  %424 = vmatprep.subr.mxu0 0.0
  %425 = vmatpush1.msra.mxu0 %v28
  %426 = vmatprep.subr.mxu0 0.0
  %427 = vmatpush1.msra.mxu0 %v27
  %428 = vmatprep.subr.mxu0 0.0
  %429 = vmatpush1.msra.mxu0 %v26
  %430 = vmatprep.subr.mxu0 0.0
  %431 = vmatpush2.msra.mxu0 0.0
  %432 = vmatprep.subr.mxu0 0.0
  %433 = vmatpush2.msra.mxu0 0.0
  %434 = vmatprep.subr.mxu0 0.0
  %435 = vmatpush2.msra.mxu0 0.0
  %436 = vmatprep.subr.mxu0 0.0
  %437 = vmatpush2.msra.mxu0 0.0
  %438 = vmatprep.subr.mxu0 0.0
  %439 = vmatpush2.msra.mxu0 0.0
  %440 = vmatprep.subr.mxu0 0.0
  %441 = vmatpush2.msra.mxu0 0.0
  %442 = vmatprep.subr.mxu0 0.0
  %443 = vmatpush2.msra.mxu0 0.0
  %444 = vmatprep.subr.mxu0 0.0
  %445 = vmatpush2.msra.mxu0 0.0
  %446 = vmatprep.subr.mxu0 0.0
  %447 = vmatpush2.msra.mxu0 0.0
  %448 = vmatprep.subr.mxu0 0.0
  %449 = vmatpush2.msra.mxu0 0.0
  %450 = vmatprep.subr.mxu0 0.0
  %451 = vmatpush2.msra.mxu0 0.0
  %452 = vmatprep.subr.mxu0 0.0
  %453 = vmatpush2.msra.mxu0 0.0
  %454 = vmatprep.subr.mxu0 0.0
  %455 = vmatpush2.msra.mxu0 0.0
  %456 = vmatprep.subr.mxu0 0.0
  %457 = vmatpush2.msra.mxu0 0.0
  %458 = vmatprep.subr.mxu0 0.0
  %459 = vmatpush2.msra.mxu0 0.0
  %460 = vmatprep.subr.mxu0 0.0
  %461 = vmatpush2.msra.mxu0 0.0
  %462 = vmatprep.mubr.f32.mxu0 0.0
  %463 = vmatmul.mubr.f32.gmra.mxu0 %v396
  %v464 = vpop.f32.mrf.mxu0
  %v465 = vadd.f32 0.0, %v464
  %v466 = vpop.f32.mrf.mxu0
  %467 = vdwg.mxu0
  %v469 = vrot.slane %v465, 2
  %v471 = vadd.f32 %v76, %v469
  %v472 = vxor.u32 %v471, 2147483648
  %v473 = vmul.f32 %v472, 1.442695
  %v474 = vpow.pop %v473
  %v475 = vadd.f32 %v474, 1.0
  %v476 = vrcp.pop %v475
  %v477 = vmul.f32 1.0, %v476
  %v478 = vtanh.pop %v471
  %v480 = vrot.slane %v385, 6
  %v482 = vmul.f32 %v477, %v480
  %484 = vrot.lane.b32.xlu0 %v478, 64
  %v485 = vpop.permute.xlu0 %484
  %v487 = vmul.f32 %v477, %v485
  %489 = vrot.lane.b32.xlu0 %v487, 32
  %v490 = vpop.permute.xlu0 %489
  %v492 = vadd.f32 %v482, %v490
  %v493 = vtanh.pop %v492
  %495 = vrot.lane.b32.xlu0 %v493, 64
  %v496 = vpop.permute.xlu0 %495
  %v498 = vmul.f32 %v477, %v496
  %v500 = vrot.slane %v498, 6
  %501 = vrot.lane.b32.xlu0 %v500, 32
  %v502 = vpop.permute.xlu0 %501
  %v503 = vsel %vm80, %v502, 0
  %505 = vmatprep.subr.mxu0 0.0
  %506 = vmatpush1.msra.mxu0 0.0
  %507 = vmatprep.subr.mxu0 0.0
  %508 = vmatpush1.msra.mxu0 0.0
  %509 = vmatprep.subr.mxu0 0.0
  %510 = vmatpush1.msra.mxu0 0.0
  %511 = vmatprep.subr.mxu0 0.0
  %512 = vmatpush1.msra.mxu0 0.0
  %513 = vmatprep.subr.mxu0 0.0
  %514 = vmatpush1.msra.mxu0 0.0
  %515 = vmatprep.subr.mxu0 0.0
  %516 = vmatpush1.msra.mxu0 0.0
  %517 = vmatprep.subr.mxu0 0.0
  %518 = vmatpush1.msra.mxu0 0.0
  %519 = vmatprep.subr.mxu0 0.0
  %520 = vmatpush1.msra.mxu0 0.0
  %521 = vmatprep.subr.mxu0 0.0
  %522 = vmatpush1.msra.mxu0 0.0
  %523 = vmatprep.subr.mxu0 0.0
  %524 = vmatpush1.msra.mxu0 0.0
  %525 = vmatprep.subr.mxu0 0.0
  %526 = vmatpush1.msra.mxu0 0.0
  %527 = vmatprep.subr.mxu0 0.0
  %528 = vmatpush1.msra.mxu0 0.0
  %529 = vmatprep.subr.mxu0 0.0
  %530 = vmatpush1.msra.mxu0 %v29
  %531 = vmatprep.subr.mxu0 0.0
  %532 = vmatpush1.msra.mxu0 %v28
  %533 = vmatprep.subr.mxu0 0.0
  %534 = vmatpush1.msra.mxu0 %v27
  %535 = vmatprep.subr.mxu0 0.0
  %536 = vmatpush1.msra.mxu0 %v26
  %537 = vmatprep.subr.mxu0 0.0
  %538 = vmatpush2.msra.mxu0 0.0
  %539 = vmatprep.subr.mxu0 0.0
  %540 = vmatpush2.msra.mxu0 0.0
  %541 = vmatprep.subr.mxu0 0.0
  %542 = vmatpush2.msra.mxu0 0.0
  %543 = vmatprep.subr.mxu0 0.0
  %544 = vmatpush2.msra.mxu0 0.0
  %545 = vmatprep.subr.mxu0 0.0
  %546 = vmatpush2.msra.mxu0 0.0
  %547 = vmatprep.subr.mxu0 0.0
  %548 = vmatpush2.msra.mxu0 0.0
  %549 = vmatprep.subr.mxu0 0.0
  %550 = vmatpush2.msra.mxu0 0.0
  %551 = vmatprep.subr.mxu0 0.0
  %552 = vmatpush2.msra.mxu0 0.0
  %553 = vmatprep.subr.mxu0 0.0
  %554 = vmatpush2.msra.mxu0 0.0
  %555 = vmatprep.subr.mxu0 0.0
  %556 = vmatpush2.msra.mxu0 0.0
  %557 = vmatprep.subr.mxu0 0.0
  %558 = vmatpush2.msra.mxu0 0.0
  %559 = vmatprep.subr.mxu0 0.0
  %560 = vmatpush2.msra.mxu0 0.0
  %561 = vmatprep.subr.mxu0 0.0
  %562 = vmatpush2.msra.mxu0 0.0
  %563 = vmatprep.subr.mxu0 0.0
  %564 = vmatpush2.msra.mxu0 0.0
  %565 = vmatprep.subr.mxu0 0.0
  %566 = vmatpush2.msra.mxu0 0.0
  %567 = vmatprep.subr.mxu0 0.0
  %568 = vmatpush2.msra.mxu0 0.0
  %569 = vmatprep.mubr.f32.mxu0 0.0
  %570 = vmatmul.mubr.f32.gmra.mxu0 %v503
  %v571 = vpop.f32.mrf.mxu0
  %v572 = vadd.f32 0.0, %v571
  %v573 = vpop.f32.mrf.mxu0
  %574 = vdwg.mxu0
  %v575 = vadd.f32 %v77, %v572
  %v576 = vxor.u32 %v575, 2147483648
  %v577 = vmul.f32 %v576, 1.442695
  %v578 = vpow.pop %v577
  %v579 = vadd.f32 %v578, 1.0
  %v580 = vrcp.pop %v579
  %v581 = vmul.f32 1.0, %v580
  %v582 = vtanh.pop %v575
  %v584 = vrot.slane %v492, 6
  %v586 = vmul.f32 %v581, %v584
  %588 = vrot.lane.b32.xlu0 %v582, 64
  %v589 = vpop.permute.xlu0 %588
  %v591 = vmul.f32 %v581, %v589
  %593 = vrot.lane.b32.xlu0 %v591, 32
  %v594 = vpop.permute.xlu0 %593
  %v596 = vadd.f32 %v586, %v594
  %v597 = vtanh.pop %v596
  %599 = vrot.lane.b32.xlu0 %v597, 64
  %v600 = vpop.permute.xlu0 %599
  %v602 = vmul.f32 %v581, %v600
  %604 = vrot.lane.b32.xlu0 %v602, 32
  %v605 = vpop.permute.xlu0 %604
  %v606 = vsel %vm80, %v605, 0
  %608 = vmatprep.subr.mxu0 0.0
  %609 = vmatpush1.msra.mxu0 0.0
  %610 = vmatprep.subr.mxu0 0.0
  %611 = vmatpush1.msra.mxu0 0.0
  %612 = vmatprep.subr.mxu0 0.0
  %613 = vmatpush1.msra.mxu0 0.0
  %614 = vmatprep.subr.mxu0 0.0
  %615 = vmatpush1.msra.mxu0 0.0
  %616 = vmatprep.subr.mxu0 0.0
  %617 = vmatpush1.msra.mxu0 0.0
  %618 = vmatprep.subr.mxu0 0.0
  %619 = vmatpush1.msra.mxu0 0.0
  %620 = vmatprep.subr.mxu0 0.0
  %621 = vmatpush1.msra.mxu0 0.0
  %622 = vmatprep.subr.mxu0 0.0
  %623 = vmatpush1.msra.mxu0 0.0
  %624 = vmatprep.subr.mxu0 0.0
  %625 = vmatpush1.msra.mxu0 0.0
  %626 = vmatprep.subr.mxu0 0.0
  %627 = vmatpush1.msra.mxu0 0.0
  %628 = vmatprep.subr.mxu0 0.0
  %629 = vmatpush1.msra.mxu0 0.0
  %630 = vmatprep.subr.mxu0 0.0
  %631 = vmatpush1.msra.mxu0 0.0
  %632 = vmatprep.subr.mxu0 0.0
  %633 = vmatpush1.msra.mxu0 %v29
  %634 = vmatprep.subr.mxu0 0.0
  %635 = vmatpush1.msra.mxu0 %v28
  %636 = vmatprep.subr.mxu0 0.0
  %637 = vmatpush1.msra.mxu0 %v27
  %638 = vmatprep.subr.mxu0 0.0
  %639 = vmatpush1.msra.mxu0 %v26
  %640 = vmatprep.subr.mxu0 0.0
  %641 = vmatpush2.msra.mxu0 0.0
  %642 = vmatprep.subr.mxu0 0.0
  %643 = vmatpush2.msra.mxu0 0.0
  %644 = vmatprep.subr.mxu0 0.0
  %645 = vmatpush2.msra.mxu0 0.0
  %646 = vmatprep.subr.mxu0 0.0
  %647 = vmatpush2.msra.mxu0 0.0
  %648 = vmatprep.subr.mxu0 0.0
  %649 = vmatpush2.msra.mxu0 0.0
  %650 = vmatprep.subr.mxu0 0.0
  %651 = vmatpush2.msra.mxu0 0.0
  %652 = vmatprep.subr.mxu0 0.0
  %653 = vmatpush2.msra.mxu0 0.0
  %654 = vmatprep.subr.mxu0 0.0
  %655 = vmatpush2.msra.mxu0 0.0
  %656 = vmatprep.subr.mxu0 0.0
  %657 = vmatpush2.msra.mxu0 0.0
  %658 = vmatprep.subr.mxu0 0.0
  %659 = vmatpush2.msra.mxu0 0.0
  %660 = vmatprep.subr.mxu0 0.0
  %661 = vmatpush2.msra.mxu0 0.0
  %662 = vmatprep.subr.mxu0 0.0
  %663 = vmatpush2.msra.mxu0 0.0
  %664 = vmatprep.subr.mxu0 0.0
  %665 = vmatpush2.msra.mxu0 0.0
  %666 = vmatprep.subr.mxu0 0.0
  %667 = vmatpush2.msra.mxu0 0.0
  %668 = vmatprep.subr.mxu0 0.0
  %669 = vmatpush2.msra.mxu0 0.0
  %670 = vmatprep.subr.mxu0 0.0
  %671 = vmatpush2.msra.mxu0 0.0
  %672 = vmatprep.mubr.f32.mxu0 0.0
  %673 = vmatmul.mubr.f32.gmra.mxu0 %v606
  %v674 = vpop.f32.mrf.mxu0
  %v675 = vadd.f32 0.0, %v674
  %v676 = vpop.f32.mrf.mxu0
  %677 = vdwg.mxu0
  %v679 = vrot.slane %v675, 6
  %v681 = vadd.f32 %v77, %v679
  %v682 = vxor.u32 %v681, 2147483648
  %v683 = vmul.f32 %v682, 1.442695
  %v684 = vpow.pop %v683
  %v685 = vadd.f32 %v684, 1.0
  %v686 = vrcp.pop %v685
  %v687 = vmul.f32 1.0, %v686
  %v688 = vtanh.pop %v681
  %v690 = vrot.slane %v596, 6
  %v692 = vmul.f32 %v687, %v690
  %694 = vrot.lane.b32.xlu0 %v688, 64
  %v695 = vpop.permute.xlu0 %694
  %v697 = vmul.f32 %v687, %v695
  %699 = vrot.lane.b32.xlu0 %v697, 32
  %v700 = vpop.permute.xlu0 %699
  %v702 = vadd.f32 %v692, %v700
  %v703 = vtanh.pop %v702
  %705 = vrot.lane.b32.xlu0 %v703, 64
  %v706 = vpop.permute.xlu0 %705
  %v708 = vmul.f32 %v687, %v706
  %v710 = vrot.slane %v708, 2
  %711 = vrot.lane.b32.xlu0 %v710, 32
  %v712 = vpop.permute.xlu0 %711
  %v713 = vsel %vm80, %v712, 0
  %715 = vmatprep.subr.mxu0 0.0
  %716 = vmatpush1.msra.mxu0 0.0
  %717 = vmatprep.subr.mxu0 0.0
  %718 = vmatpush1.msra.mxu0 0.0
  %719 = vmatprep.subr.mxu0 0.0
  %720 = vmatpush1.msra.mxu0 0.0
  %721 = vmatprep.subr.mxu0 0.0
  %722 = vmatpush1.msra.mxu0 0.0
  %723 = vmatprep.subr.mxu0 0.0
  %724 = vmatpush1.msra.mxu0 0.0
  %725 = vmatprep.subr.mxu0 0.0
  %726 = vmatpush1.msra.mxu0 0.0
  %727 = vmatprep.subr.mxu0 0.0
  %728 = vmatpush1.msra.mxu0 0.0
  %729 = vmatprep.subr.mxu0 0.0
  %730 = vmatpush1.msra.mxu0 0.0
  %731 = vmatprep.subr.mxu0 0.0
  %732 = vmatpush1.msra.mxu0 0.0
  %733 = vmatprep.subr.mxu0 0.0
  %734 = vmatpush1.msra.mxu0 0.0
  %735 = vmatprep.subr.mxu0 0.0
  %736 = vmatpush1.msra.mxu0 0.0
  %737 = vmatprep.subr.mxu0 0.0
  %738 = vmatpush1.msra.mxu0 0.0
  %739 = vmatprep.subr.mxu0 0.0
  %740 = vmatpush1.msra.mxu0 %v29
  %741 = vmatprep.subr.mxu0 0.0
  %742 = vmatpush1.msra.mxu0 %v28
  %743 = vmatprep.subr.mxu0 0.0
  %744 = vmatpush1.msra.mxu0 %v27
  %745 = vmatprep.subr.mxu0 0.0
  %746 = vmatpush1.msra.mxu0 %v26
  %747 = vmatprep.subr.mxu0 0.0
  %748 = vmatpush2.msra.mxu0 0.0
  %749 = vmatprep.subr.mxu0 0.0
  %750 = vmatpush2.msra.mxu0 0.0
  %751 = vmatprep.subr.mxu0 0.0
  %752 = vmatpush2.msra.mxu0 0.0
  %753 = vmatprep.subr.mxu0 0.0
  %754 = vmatpush2.msra.mxu0 0.0
  %755 = vmatprep.subr.mxu0 0.0
  %756 = vmatpush2.msra.mxu0 0.0
  %757 = vmatprep.subr.mxu0 0.0
  %758 = vmatpush2.msra.mxu0 0.0
  %759 = vmatprep.subr.mxu0 0.0
  %760 = vmatpush2.msra.mxu0 0.0
  %761 = vmatprep.subr.mxu0 0.0
  %762 = vmatpush2.msra.mxu0 0.0
  %763 = vmatprep.subr.mxu0 0.0
  %764 = vmatpush2.msra.mxu0 0.0
  %765 = vmatprep.subr.mxu0 0.0
  %766 = vmatpush2.msra.mxu0 0.0
  %767 = vmatprep.subr.mxu0 0.0
  %768 = vmatpush2.msra.mxu0 0.0
  %769 = vmatprep.subr.mxu0 0.0
  %770 = vmatpush2.msra.mxu0 0.0
  %771 = vmatprep.subr.mxu0 0.0
  %772 = vmatpush2.msra.mxu0 0.0
  %773 = vmatprep.subr.mxu0 0.0
  %774 = vmatpush2.msra.mxu0 0.0
  %775 = vmatprep.subr.mxu0 0.0
  %776 = vmatpush2.msra.mxu0 0.0
  %777 = vmatprep.subr.mxu0 0.0
  %778 = vmatpush2.msra.mxu0 0.0
  %779 = vmatprep.mubr.f32.mxu0 0.0
  %780 = vmatmul.mubr.f32.gmra.mxu0 %v713
  %v781 = vpop.f32.mrf.mxu0
  %v782 = vadd.f32 0.0, %v781
  %v783 = vpop.f32.mrf.mxu0
  %784 = vdwg.mxu0
  %v786 = vrot.slane %v782, 4
  %v788 = vadd.f32 %v77, %v786
  %v789 = vxor.u32 %v788, 2147483648
  %v790 = vmul.f32 %v789, 1.442695
  %v791 = vpow.pop %v790
  %v792 = vadd.f32 %v791, 1.0
  %v793 = vrcp.pop %v792
  %v794 = vmul.f32 1.0, %v793
  %v795 = vtanh.pop %v788
  %v797 = vrot.slane %v702, 6
  %v799 = vmul.f32 %v794, %v797
  %801 = vrot.lane.b32.xlu0 %v795, 64
  %v802 = vpop.permute.xlu0 %801
  %v804 = vmul.f32 %v794, %v802
  %806 = vrot.lane.b32.xlu0 %v804, 32
  %v807 = vpop.permute.xlu0 %806
  %v809 = vadd.f32 %v799, %v807
  %v810 = vtanh.pop %v809
  %812 = vrot.lane.b32.xlu0 %v810, 64
  %v813 = vpop.permute.xlu0 %812
  %v815 = vmul.f32 %v794, %v813
  %v817 = vrot.slane %v815, 4
  %818 = vrot.lane.b32.xlu0 %v817, 32
  %v819 = vpop.permute.xlu0 %818
  %v820 = vsel %vm80, %v819, 0
  %822 = vmatprep.subr.mxu0 0.0
  %823 = vmatpush1.msra.mxu0 0.0
  %824 = vmatprep.subr.mxu0 0.0
  %825 = vmatpush1.msra.mxu0 0.0
  %826 = vmatprep.subr.mxu0 0.0
  %827 = vmatpush1.msra.mxu0 0.0
  %828 = vmatprep.subr.mxu0 0.0
  %829 = vmatpush1.msra.mxu0 0.0
  %830 = vmatprep.subr.mxu0 0.0
  %831 = vmatpush1.msra.mxu0 0.0
  %832 = vmatprep.subr.mxu0 0.0
  %833 = vmatpush1.msra.mxu0 0.0
  %834 = vmatprep.subr.mxu0 0.0
  %835 = vmatpush1.msra.mxu0 0.0
  %836 = vmatprep.subr.mxu0 0.0
  %837 = vmatpush1.msra.mxu0 0.0
  %838 = vmatprep.subr.mxu0 0.0
  %839 = vmatpush1.msra.mxu0 0.0
  %840 = vmatprep.subr.mxu0 0.0
  %841 = vmatpush1.msra.mxu0 0.0
  %842 = vmatprep.subr.mxu0 0.0
  %843 = vmatpush1.msra.mxu0 0.0
  %844 = vmatprep.subr.mxu0 0.0
  %845 = vmatpush1.msra.mxu0 0.0
  %846 = vmatprep.subr.mxu0 0.0
  %847 = vmatpush1.msra.mxu0 %v29
  %848 = vmatprep.subr.mxu0 0.0
  %849 = vmatpush1.msra.mxu0 %v28
  %850 = vmatprep.subr.mxu0 0.0
  %851 = vmatpush1.msra.mxu0 %v27
  %852 = vmatprep.subr.mxu0 0.0
  %853 = vmatpush1.msra.mxu0 %v26
  %854 = vmatprep.subr.mxu0 0.0
  %855 = vmatpush2.msra.mxu0 0.0
  %856 = vmatprep.subr.mxu0 0.0
  %857 = vmatpush2.msra.mxu0 0.0
  %858 = vmatprep.subr.mxu0 0.0
  %859 = vmatpush2.msra.mxu0 0.0
  %860 = vmatprep.subr.mxu0 0.0
  %861 = vmatpush2.msra.mxu0 0.0
  %862 = vmatprep.subr.mxu0 0.0
  %863 = vmatpush2.msra.mxu0 0.0
  %864 = vmatprep.subr.mxu0 0.0
  %865 = vmatpush2.msra.mxu0 0.0
  %866 = vmatprep.subr.mxu0 0.0
  %867 = vmatpush2.msra.mxu0 0.0
  %868 = vmatprep.subr.mxu0 0.0
  %869 = vmatpush2.msra.mxu0 0.0
  %870 = vmatprep.subr.mxu0 0.0
  %871 = vmatpush2.msra.mxu0 0.0
  %872 = vmatprep.subr.mxu0 0.0
  %873 = vmatpush2.msra.mxu0 0.0
  %874 = vmatprep.subr.mxu0 0.0
  %875 = vmatpush2.msra.mxu0 0.0
  %876 = vmatprep.subr.mxu0 0.0
  %877 = vmatpush2.msra.mxu0 0.0
  %878 = vmatprep.subr.mxu0 0.0
  %879 = vmatpush2.msra.mxu0 0.0
  %880 = vmatprep.subr.mxu0 0.0
  %881 = vmatpush2.msra.mxu0 0.0
  %882 = vmatprep.subr.mxu0 0.0
  %883 = vmatpush2.msra.mxu0 0.0
  %884 = vmatprep.subr.mxu0 0.0
  %885 = vmatpush2.msra.mxu0 0.0
  %886 = vmatprep.mubr.f32.mxu0 0.0
  %887 = vmatmul.mubr.f32.gmra.mxu0 %v820
  %v888 = vpop.f32.mrf.mxu0
  %v889 = vadd.f32 0.0, %v888
  %v890 = vpop.f32.mrf.mxu0
  %891 = vdwg.mxu0
  %v893 = vrot.slane %v889, 2
  %v895 = vadd.f32 %v77, %v893
  %v896 = vxor.u32 %v895, 2147483648
  %v897 = vmul.f32 %v896, 1.442695
  %v898 = vpow.pop %v897
  %v899 = vadd.f32 %v898, 1.0
  %v900 = vrcp.pop %v899
  %v901 = vmul.f32 1.0, %v900
  %v902 = vtanh.pop %v895
  %v904 = vrot.slane %v809, 6
  %v906 = vmul.f32 %v901, %v904
  %908 = vrot.lane.b32.xlu0 %v902, 64
  %v909 = vpop.permute.xlu0 %908
  %v911 = vmul.f32 %v901, %v909
  %913 = vrot.lane.b32.xlu0 %v911, 32
  %v914 = vpop.permute.xlu0 %913
  %v916 = vadd.f32 %v906, %v914
  %v917 = vtanh.pop %v916
  %919 = vrot.lane.b32.xlu0 %v917, 64
  %v920 = vpop.permute.xlu0 %919
  %v922 = vmul.f32 %v901, %v920
  %v924 = vrot.slane %v922, 6
  %925 = vrot.lane.b32.xlu0 %v924, 32
  %v926 = vpop.permute.xlu0 %925
  %v927 = vsel %vm80, %v926, 0
  %929 = vmatprep.subr.mxu0 0.0
  %930 = vmatpush1.msra.mxu0 0.0
  %931 = vmatprep.subr.mxu0 0.0
  %932 = vmatpush1.msra.mxu0 0.0
  %933 = vmatprep.subr.mxu0 0.0
  %934 = vmatpush1.msra.mxu0 0.0
  %935 = vmatprep.subr.mxu0 0.0
  %936 = vmatpush1.msra.mxu0 0.0
  %937 = vmatprep.subr.mxu0 0.0
  %938 = vmatpush1.msra.mxu0 0.0
  %939 = vmatprep.subr.mxu0 0.0
  %940 = vmatpush1.msra.mxu0 0.0
  %941 = vmatprep.subr.mxu0 0.0
  %942 = vmatpush1.msra.mxu0 0.0
  %943 = vmatprep.subr.mxu0 0.0
  %944 = vmatpush1.msra.mxu0 0.0
  %945 = vmatprep.subr.mxu0 0.0
  %946 = vmatpush1.msra.mxu0 0.0
  %947 = vmatprep.subr.mxu0 0.0
  %948 = vmatpush1.msra.mxu0 0.0
  %949 = vmatprep.subr.mxu0 0.0
  %950 = vmatpush1.msra.mxu0 0.0
  %951 = vmatprep.subr.mxu0 0.0
  %952 = vmatpush1.msra.mxu0 0.0
  %953 = vmatprep.subr.mxu0 0.0
  %954 = vmatpush1.msra.mxu0 %v29
  %955 = vmatprep.subr.mxu0 0.0
  %956 = vmatpush1.msra.mxu0 %v28
  %957 = vmatprep.subr.mxu0 0.0
  %958 = vmatpush1.msra.mxu0 %v27
  %959 = vmatprep.subr.mxu0 0.0
  %960 = vmatpush1.msra.mxu0 %v26
  %961 = vmatprep.subr.mxu0 0.0
  %962 = vmatpush2.msra.mxu0 0.0
  %963 = vmatprep.subr.mxu0 0.0
  %964 = vmatpush2.msra.mxu0 0.0
  %965 = vmatprep.subr.mxu0 0.0
  %966 = vmatpush2.msra.mxu0 0.0
  %967 = vmatprep.subr.mxu0 0.0
  %968 = vmatpush2.msra.mxu0 0.0
  %969 = vmatprep.subr.mxu0 0.0
  %970 = vmatpush2.msra.mxu0 0.0
  %971 = vmatprep.subr.mxu0 0.0
  %972 = vmatpush2.msra.mxu0 0.0
  %973 = vmatprep.subr.mxu0 0.0
  %974 = vmatpush2.msra.mxu0 0.0
  %975 = vmatprep.subr.mxu0 0.0
  %976 = vmatpush2.msra.mxu0 0.0
  %977 = vmatprep.subr.mxu0 0.0
  %978 = vmatpush2.msra.mxu0 0.0
  %979 = vmatprep.subr.mxu0 0.0
  %980 = vmatpush2.msra.mxu0 0.0
  %981 = vmatprep.subr.mxu0 0.0
  %982 = vmatpush2.msra.mxu0 0.0
  %983 = vmatprep.subr.mxu0 0.0
  %984 = vmatpush2.msra.mxu0 0.0
  %985 = vmatprep.subr.mxu0 0.0
  %986 = vmatpush2.msra.mxu0 0.0
  %987 = vmatprep.subr.mxu0 0.0
  %988 = vmatpush2.msra.mxu0 0.0
  %989 = vmatprep.subr.mxu0 0.0
  %990 = vmatpush2.msra.mxu0 0.0
  %991 = vmatprep.subr.mxu0 0.0
  %992 = vmatpush2.msra.mxu0 0.0
  %993 = vmatprep.mubr.f32.mxu0 0.0
  %994 = vmatmul.mubr.f32.gmra.mxu0 %v927
  %v995 = vpop.f32.mrf.mxu0
  %v996 = vadd.f32 0.0, %v995
  %v997 = vpop.f32.mrf.mxu0
  %998 = vdwg.mxu0
  %v999 = vadd.f32 %v78, %v996
  %v1000 = vxor.u32 %v999, 2147483648
  %v1001 = vmul.f32 %v1000, 1.442695
  %v1002 = vpow.pop %v1001
  %v1003 = vadd.f32 %v1002, 1.0
  %v1004 = vrcp.pop %v1003
  %v1005 = vmul.f32 1.0, %v1004
  %v1006 = vtanh.pop %v999
  %v1008 = vrot.slane %v916, 6
  %v1010 = vmul.f32 %v1005, %v1008
  %1012 = vrot.lane.b32.xlu0 %v1006, 64
  %v1013 = vpop.permute.xlu0 %1012
  %v1015 = vmul.f32 %v1005, %v1013
  %1017 = vrot.lane.b32.xlu0 %v1015, 32
  %v1018 = vpop.permute.xlu0 %1017
  %v1020 = vadd.f32 %v1010, %v1018
  %v1021 = vtanh.pop %v1020
  %1023 = vrot.lane.b32.xlu0 %v1021, 64
  %v1024 = vpop.permute.xlu0 %1023
  %v1026 = vmul.f32 %v1005, %v1024
  %1028 = vrot.lane.b32.xlu0 %v1026, 32
  %v1029 = vpop.permute.xlu0 %1028
  %v1030 = vsel %vm80, %v1029, 0
  %1032 = vmatprep.subr.mxu0 0.0
  %1033 = vmatpush1.msra.mxu0 0.0
  %1034 = vmatprep.subr.mxu0 0.0
  %1035 = vmatpush1.msra.mxu0 0.0
  %1036 = vmatprep.subr.mxu0 0.0
  %1037 = vmatpush1.msra.mxu0 0.0
  %1038 = vmatprep.subr.mxu0 0.0
  %1039 = vmatpush1.msra.mxu0 0.0
  %1040 = vmatprep.subr.mxu0 0.0
  %1041 = vmatpush1.msra.mxu0 0.0
  %1042 = vmatprep.subr.mxu0 0.0
  %1043 = vmatpush1.msra.mxu0 0.0
  %1044 = vmatprep.subr.mxu0 0.0
  %1045 = vmatpush1.msra.mxu0 0.0
  %1046 = vmatprep.subr.mxu0 0.0
  %1047 = vmatpush1.msra.mxu0 0.0
  %1048 = vmatprep.subr.mxu0 0.0
  %1049 = vmatpush1.msra.mxu0 0.0
  %1050 = vmatprep.subr.mxu0 0.0
  %1051 = vmatpush1.msra.mxu0 0.0
  %1052 = vmatprep.subr.mxu0 0.0
  %1053 = vmatpush1.msra.mxu0 0.0
  %1054 = vmatprep.subr.mxu0 0.0
  %1055 = vmatpush1.msra.mxu0 0.0
  %1056 = vmatprep.subr.mxu0 0.0
  %1057 = vmatpush1.msra.mxu0 %v29
  %1058 = vmatprep.subr.mxu0 0.0
  %1059 = vmatpush1.msra.mxu0 %v28
  %1060 = vmatprep.subr.mxu0 0.0
  %1061 = vmatpush1.msra.mxu0 %v27
  %1062 = vmatprep.subr.mxu0 0.0
  %1063 = vmatpush1.msra.mxu0 %v26
  %1064 = vmatprep.subr.mxu0 0.0
  %1065 = vmatpush2.msra.mxu0 0.0
  %1066 = vmatprep.subr.mxu0 0.0
  %1067 = vmatpush2.msra.mxu0 0.0
  %1068 = vmatprep.subr.mxu0 0.0
  %1069 = vmatpush2.msra.mxu0 0.0
  %1070 = vmatprep.subr.mxu0 0.0
  %1071 = vmatpush2.msra.mxu0 0.0
  %1072 = vmatprep.subr.mxu0 0.0
  %1073 = vmatpush2.msra.mxu0 0.0
  %1074 = vmatprep.subr.mxu0 0.0
  %1075 = vmatpush2.msra.mxu0 0.0
  %1076 = vmatprep.subr.mxu0 0.0
  %1077 = vmatpush2.msra.mxu0 0.0
  %1078 = vmatprep.subr.mxu0 0.0
  %1079 = vmatpush2.msra.mxu0 0.0
  %1080 = vmatprep.subr.mxu0 0.0
  %1081 = vmatpush2.msra.mxu0 0.0
  %1082 = vmatprep.subr.mxu0 0.0
  %1083 = vmatpush2.msra.mxu0 0.0
  %1084 = vmatprep.subr.mxu0 0.0
  %1085 = vmatpush2.msra.mxu0 0.0
  %1086 = vmatprep.subr.mxu0 0.0
  %1087 = vmatpush2.msra.mxu0 0.0
  %1088 = vmatprep.subr.mxu0 0.0
  %1089 = vmatpush2.msra.mxu0 0.0
  %1090 = vmatprep.subr.mxu0 0.0
  %1091 = vmatpush2.msra.mxu0 0.0
  %1092 = vmatprep.subr.mxu0 0.0
  %1093 = vmatpush2.msra.mxu0 0.0
  %1094 = vmatprep.subr.mxu0 0.0
  %1095 = vmatpush2.msra.mxu0 0.0
  %1096 = vmatprep.mubr.f32.mxu0 0.0
  %1097 = vmatmul.mubr.f32.gmra.mxu0 %v1030
  %v1098 = vpop.f32.mrf.mxu0
  %v1099 = vadd.f32 0.0, %v1098
  %v1100 = vpop.f32.mrf.mxu0
  %1101 = vdwg.mxu0
  %v1103 = vrot.slane %v1099, 6
  %v1105 = vadd.f32 %v78, %v1103
  %v1106 = vxor.u32 %v1105, 2147483648
  %v1107 = vmul.f32 %v1106, 1.442695
  %v1108 = vpow.pop %v1107
  %v1109 = vadd.f32 %v1108, 1.0
  %v1110 = vrcp.pop %v1109
  %v1111 = vmul.f32 1.0, %v1110
  %v1112 = vtanh.pop %v1105
  %v1114 = vrot.slane %v1020, 6
  %v1116 = vmul.f32 %v1111, %v1114
  %1118 = vrot.lane.b32.xlu0 %v1112, 64
  %v1119 = vpop.permute.xlu0 %1118
  %v1121 = vmul.f32 %v1111, %v1119
  %1123 = vrot.lane.b32.xlu0 %v1121, 32
  %v1124 = vpop.permute.xlu0 %1123
  %v1126 = vadd.f32 %v1116, %v1124
  %v1127 = vtanh.pop %v1126
  %1129 = vrot.lane.b32.xlu0 %v1127, 64
  %v1130 = vpop.permute.xlu0 %1129
  %v1132 = vmul.f32 %v1111, %v1130
  %v1134 = vrot.slane %v1132, 2
  %1135 = vrot.lane.b32.xlu0 %v1134, 32
  %v1136 = vpop.permute.xlu0 %1135
  %v1137 = vsel %vm80, %v1136, 0
  %1139 = vmatprep.subr.mxu0 0.0
  %1140 = vmatpush1.msra.mxu0 0.0
  %1141 = vmatprep.subr.mxu0 0.0
  %1142 = vmatpush1.msra.mxu0 0.0
  %1143 = vmatprep.subr.mxu0 0.0
  %1144 = vmatpush1.msra.mxu0 0.0
  %1145 = vmatprep.subr.mxu0 0.0
  %1146 = vmatpush1.msra.mxu0 0.0
  %1147 = vmatprep.subr.mxu0 0.0
  %1148 = vmatpush1.msra.mxu0 0.0
  %1149 = vmatprep.subr.mxu0 0.0
  %1150 = vmatpush1.msra.mxu0 0.0
  %1151 = vmatprep.subr.mxu0 0.0
  %1152 = vmatpush1.msra.mxu0 0.0
  %1153 = vmatprep.subr.mxu0 0.0
  %1154 = vmatpush1.msra.mxu0 0.0
  %1155 = vmatprep.subr.mxu0 0.0
  %1156 = vmatpush1.msra.mxu0 0.0
  %1157 = vmatprep.subr.mxu0 0.0
  %1158 = vmatpush1.msra.mxu0 0.0
  %1159 = vmatprep.subr.mxu0 0.0
  %1160 = vmatpush1.msra.mxu0 0.0
  %1161 = vmatprep.subr.mxu0 0.0
  %1162 = vmatpush1.msra.mxu0 0.0
  %1163 = vmatprep.subr.mxu0 0.0
  %1164 = vmatpush1.msra.mxu0 %v29
  %1165 = vmatprep.subr.mxu0 0.0
  %1166 = vmatpush1.msra.mxu0 %v28
  %1167 = vmatprep.subr.mxu0 0.0
  %1168 = vmatpush1.msra.mxu0 %v27
  %1169 = vmatprep.subr.mxu0 0.0
  %1170 = vmatpush1.msra.mxu0 %v26
  %1171 = vmatprep.subr.mxu0 0.0
  %1172 = vmatpush2.msra.mxu0 0.0
  %1173 = vmatprep.subr.mxu0 0.0
  %1174 = vmatpush2.msra.mxu0 0.0
  %1175 = vmatprep.subr.mxu0 0.0
  %1176 = vmatpush2.msra.mxu0 0.0
  %1177 = vmatprep.subr.mxu0 0.0
  %1178 = vmatpush2.msra.mxu0 0.0
  %1179 = vmatprep.subr.mxu0 0.0
  %1180 = vmatpush2.msra.mxu0 0.0
  %1181 = vmatprep.subr.mxu0 0.0
  %1182 = vmatpush2.msra.mxu0 0.0
  %1183 = vmatprep.subr.mxu0 0.0
  %1184 = vmatpush2.msra.mxu0 0.0
  %1185 = vmatprep.subr.mxu0 0.0
  %1186 = vmatpush2.msra.mxu0 0.0
  %1187 = vmatprep.subr.mxu0 0.0
  %1188 = vmatpush2.msra.mxu0 0.0
  %1189 = vmatprep.subr.mxu0 0.0
  %1190 = vmatpush2.msra.mxu0 0.0
  %1191 = vmatprep.subr.mxu0 0.0
  %1192 = vmatpush2.msra.mxu0 0.0
  %1193 = vmatprep.subr.mxu0 0.0
  %1194 = vmatpush2.msra.mxu0 0.0
  %1195 = vmatprep.subr.mxu0 0.0
  %1196 = vmatpush2.msra.mxu0 0.0
  %1197 = vmatprep.subr.mxu0 0.0
  %1198 = vmatpush2.msra.mxu0 0.0
  %1199 = vmatprep.subr.mxu0 0.0
  %1200 = vmatpush2.msra.mxu0 0.0
  %1201 = vmatprep.subr.mxu0 0.0
  %1202 = vmatpush2.msra.mxu0 0.0
  %1203 = vmatprep.mubr.f32.mxu0 0.0
  %1204 = vmatmul.mubr.f32.gmra.mxu0 %v1137
  %v1205 = vpop.f32.mrf.mxu0
  %v1206 = vadd.f32 0.0, %v1205
  %v1207 = vpop.f32.mrf.mxu0
  %1208 = vdwg.mxu0
  %v1210 = vrot.slane %v1206, 4
  %v1212 = vadd.f32 %v78, %v1210
  %v1213 = vxor.u32 %v1212, 2147483648
  %v1214 = vmul.f32 %v1213, 1.442695
  %v1215 = vpow.pop %v1214
  %v1216 = vadd.f32 %v1215, 1.0
  %v1217 = vrcp.pop %v1216
  %v1218 = vmul.f32 1.0, %v1217
  %v1219 = vtanh.pop %v1212
  %v1221 = vrot.slane %v1126, 6
  %v1223 = vmul.f32 %v1218, %v1221
  %1225 = vrot.lane.b32.xlu0 %v1219, 64
  %v1226 = vpop.permute.xlu0 %1225
  %v1228 = vmul.f32 %v1218, %v1226
  %1230 = vrot.lane.b32.xlu0 %v1228, 32
  %v1231 = vpop.permute.xlu0 %1230
  %v1233 = vadd.f32 %v1223, %v1231
  %v1234 = vtanh.pop %v1233
  %1236 = vrot.lane.b32.xlu0 %v1234, 64
  %v1237 = vpop.permute.xlu0 %1236
  %v1239 = vmul.f32 %v1218, %v1237
  %v1241 = vrot.slane %v1239, 4
  %1242 = vrot.lane.b32.xlu0 %v1241, 32
  %v1243 = vpop.permute.xlu0 %1242
  %v1244 = vsel %vm80, %v1243, 0
  %1246 = vmatprep.subr.mxu0 0.0
  %1247 = vmatpush1.msra.mxu0 0.0
  %1248 = vmatprep.subr.mxu0 0.0
  %1249 = vmatpush1.msra.mxu0 0.0
  %1250 = vmatprep.subr.mxu0 0.0
  %1251 = vmatpush1.msra.mxu0 0.0
  %1252 = vmatprep.subr.mxu0 0.0
  %1253 = vmatpush1.msra.mxu0 0.0
  %1254 = vmatprep.subr.mxu0 0.0
  %1255 = vmatpush1.msra.mxu0 0.0
  %1256 = vmatprep.subr.mxu0 0.0
  %1257 = vmatpush1.msra.mxu0 0.0
  %1258 = vmatprep.subr.mxu0 0.0
  %1259 = vmatpush1.msra.mxu0 0.0
  %1260 = vmatprep.subr.mxu0 0.0
  %1261 = vmatpush1.msra.mxu0 0.0
  %1262 = vmatprep.subr.mxu0 0.0
  %1263 = vmatpush1.msra.mxu0 0.0
  %1264 = vmatprep.subr.mxu0 0.0
  %1265 = vmatpush1.msra.mxu0 0.0
  %1266 = vmatprep.subr.mxu0 0.0
  %1267 = vmatpush1.msra.mxu0 0.0
  %1268 = vmatprep.subr.mxu0 0.0
  %1269 = vmatpush1.msra.mxu0 0.0
  %1270 = vmatprep.subr.mxu0 0.0
  %1271 = vmatpush1.msra.mxu0 %v29
  %1272 = vmatprep.subr.mxu0 0.0
  %1273 = vmatpush1.msra.mxu0 %v28
  %1274 = vmatprep.subr.mxu0 0.0
  %1275 = vmatpush1.msra.mxu0 %v27
  %1276 = vmatprep.subr.mxu0 0.0
  %1277 = vmatpush1.msra.mxu0 %v26
  %1278 = vmatprep.subr.mxu0 0.0
  %1279 = vmatpush2.msra.mxu0 0.0
  %1280 = vmatprep.subr.mxu0 0.0
  %1281 = vmatpush2.msra.mxu0 0.0
  %1282 = vmatprep.subr.mxu0 0.0
  %1283 = vmatpush2.msra.mxu0 0.0
  %1284 = vmatprep.subr.mxu0 0.0
  %1285 = vmatpush2.msra.mxu0 0.0
  %1286 = vmatprep.subr.mxu0 0.0
  %1287 = vmatpush2.msra.mxu0 0.0
  %1288 = vmatprep.subr.mxu0 0.0
  %1289 = vmatpush2.msra.mxu0 0.0
  %1290 = vmatprep.subr.mxu0 0.0
  %1291 = vmatpush2.msra.mxu0 0.0
  %1292 = vmatprep.subr.mxu0 0.0
  %1293 = vmatpush2.msra.mxu0 0.0
  %1294 = vmatprep.subr.mxu0 0.0
  %1295 = vmatpush2.msra.mxu0 0.0
  %1296 = vmatprep.subr.mxu0 0.0
  %1297 = vmatpush2.msra.mxu0 0.0
  %1298 = vmatprep.subr.mxu0 0.0
  %1299 = vmatpush2.msra.mxu0 0.0
  %1300 = vmatprep.subr.mxu0 0.0
  %1301 = vmatpush2.msra.mxu0 0.0
  %1302 = vmatprep.subr.mxu0 0.0
  %1303 = vmatpush2.msra.mxu0 0.0
  %1304 = vmatprep.subr.mxu0 0.0
  %1305 = vmatpush2.msra.mxu0 0.0
  %1306 = vmatprep.subr.mxu0 0.0
  %1307 = vmatpush2.msra.mxu0 0.0
  %1308 = vmatprep.subr.mxu0 0.0
  %1309 = vmatpush2.msra.mxu0 0.0
  %1310 = vmatprep.mubr.f32.mxu0 0.0
  %1311 = vmatmul.mubr.f32.gmra.mxu0 %v1244
  %v1312 = vpop.f32.mrf.mxu0
  %v1313 = vadd.f32 0.0, %v1312
  %v1314 = vpop.f32.mrf.mxu0
  %1315 = vdwg.mxu0
  %v1317 = vrot.slane %v1313, 2
  %v1319 = vadd.f32 %v78, %v1317
  %v1320 = vxor.u32 %v1319, 2147483648
  %v1321 = vmul.f32 %v1320, 1.442695
  %v1322 = vpow.pop %v1321
  %v1323 = vadd.f32 %v1322, 1.0
  %v1324 = vrcp.pop %v1323
  %v1325 = vmul.f32 1.0, %v1324
  %v1326 = vtanh.pop %v1319
  %v1328 = vrot.slane %v1233, 6
  %v1330 = vmul.f32 %v1325, %v1328
  %1332 = vrot.lane.b32.xlu0 %v1326, 64
  %v1333 = vpop.permute.xlu0 %1332
  %v1335 = vmul.f32 %v1325, %v1333
  %1337 = vrot.lane.b32.xlu0 %v1335, 32
  %v1338 = vpop.permute.xlu0 %1337
  %v1340 = vadd.f32 %v1330, %v1338
  %v1341 = vtanh.pop %v1340
  %1343 = vrot.lane.b32.xlu0 %v1341, 64
  %v1344 = vpop.permute.xlu0 %1343
  %v1346 = vmul.f32 %v1325, %v1344
  %v1348 = vrot.slane %v1346, 6
  %1349 = vrot.lane.b32.xlu0 %v1348, 32
  %v1350 = vpop.permute.xlu0 %1349
  %v1351 = vsel %vm80, %v1350, 0
  %1353 = vmatprep.subr.mxu0 0.0
  %1354 = vmatpush1.msra.mxu0 0.0
  %1355 = vmatprep.subr.mxu0 0.0
  %1356 = vmatpush1.msra.mxu0 0.0
  %1357 = vmatprep.subr.mxu0 0.0
  %1358 = vmatpush1.msra.mxu0 0.0
  %1359 = vmatprep.subr.mxu0 0.0
  %1360 = vmatpush1.msra.mxu0 0.0
  %1361 = vmatprep.subr.mxu0 0.0
  %1362 = vmatpush1.msra.mxu0 0.0
  %1363 = vmatprep.subr.mxu0 0.0
  %1364 = vmatpush1.msra.mxu0 0.0
  %1365 = vmatprep.subr.mxu0 0.0
  %1366 = vmatpush1.msra.mxu0 0.0
  %1367 = vmatprep.subr.mxu0 0.0
  %1368 = vmatpush1.msra.mxu0 0.0
  %1369 = vmatprep.subr.mxu0 0.0
  %1370 = vmatpush1.msra.mxu0 0.0
  %1371 = vmatprep.subr.mxu0 0.0
  %1372 = vmatpush1.msra.mxu0 0.0
  %1373 = vmatprep.subr.mxu0 0.0
  %1374 = vmatpush1.msra.mxu0 0.0
  %1375 = vmatprep.subr.mxu0 0.0
  %1376 = vmatpush1.msra.mxu0 0.0
  %1377 = vmatprep.subr.mxu0 0.0
  %1378 = vmatpush1.msra.mxu0 %v29
  %1379 = vmatprep.subr.mxu0 0.0
  %1380 = vmatpush1.msra.mxu0 %v28
  %1381 = vmatprep.subr.mxu0 0.0
  %1382 = vmatpush1.msra.mxu0 %v27
  %1383 = vmatprep.subr.mxu0 0.0
  %1384 = vmatpush1.msra.mxu0 %v26
  %1385 = vmatprep.subr.mxu0 0.0
  %1386 = vmatpush2.msra.mxu0 0.0
  %1387 = vmatprep.subr.mxu0 0.0
  %1388 = vmatpush2.msra.mxu0 0.0
  %1389 = vmatprep.subr.mxu0 0.0
  %1390 = vmatpush2.msra.mxu0 0.0
  %1391 = vmatprep.subr.mxu0 0.0
  %1392 = vmatpush2.msra.mxu0 0.0
  %1393 = vmatprep.subr.mxu0 0.0
  %1394 = vmatpush2.msra.mxu0 0.0
  %1395 = vmatprep.subr.mxu0 0.0
  %1396 = vmatpush2.msra.mxu0 0.0
  %1397 = vmatprep.subr.mxu0 0.0
  %1398 = vmatpush2.msra.mxu0 0.0
  %1399 = vmatprep.subr.mxu0 0.0
  %1400 = vmatpush2.msra.mxu0 0.0
  %1401 = vmatprep.subr.mxu0 0.0
  %1402 = vmatpush2.msra.mxu0 0.0
  %1403 = vmatprep.subr.mxu0 0.0
  %1404 = vmatpush2.msra.mxu0 0.0
  %1405 = vmatprep.subr.mxu0 0.0
  %1406 = vmatpush2.msra.mxu0 0.0
  %1407 = vmatprep.subr.mxu0 0.0
  %1408 = vmatpush2.msra.mxu0 0.0
  %1409 = vmatprep.subr.mxu0 0.0
  %1410 = vmatpush2.msra.mxu0 0.0
  %1411 = vmatprep.subr.mxu0 0.0
  %1412 = vmatpush2.msra.mxu0 0.0
  %1413 = vmatprep.subr.mxu0 0.0
  %1414 = vmatpush2.msra.mxu0 0.0
  %1415 = vmatprep.subr.mxu0 0.0
  %1416 = vmatpush2.msra.mxu0 0.0
  %1417 = vmatprep.mubr.f32.mxu0 0.0
  %1418 = vmatmul.mubr.f32.gmra.mxu0 %v1351
  %v1419 = vpop.f32.mrf.mxu0
  %v1420 = vadd.f32 0.0, %v1419
  %v1421 = vpop.f32.mrf.mxu0
  %1422 = vdwg.mxu0
  %v1423 = vadd.f32 %v79, %v1420
  %v1424 = vxor.u32 %v1423, 2147483648
  %v1425 = vmul.f32 %v1424, 1.442695
  %v1426 = vpow.pop %v1425
  %v1427 = vadd.f32 %v1426, 1.0
  %v1428 = vrcp.pop %v1427
  %v1429 = vmul.f32 1.0, %v1428
  %v1430 = vtanh.pop %v1423
  %v1432 = vrot.slane %v1340, 6
  %v1434 = vmul.f32 %v1429, %v1432
  %1436 = vrot.lane.b32.xlu0 %v1430, 64
  %v1437 = vpop.permute.xlu0 %1436
  %v1439 = vmul.f32 %v1429, %v1437
  %1441 = vrot.lane.b32.xlu0 %v1439, 32
  %v1442 = vpop.permute.xlu0 %1441
  %v1444 = vadd.f32 %v1434, %v1442
  %v1445 = vtanh.pop %v1444
  %1447 = vrot.lane.b32.xlu0 %v1445, 64
  %v1448 = vpop.permute.xlu0 %1447
  %v1450 = vmul.f32 %v1429, %v1448
  %1452 = vrot.lane.b32.xlu0 %v1450, 32
  %v1453 = vpop.permute.xlu0 %1452
  %v1454 = vsel %vm80, %v1453, 0
  %1456 = vmatprep.subr.mxu0 0.0
  %1457 = vmatpush1.msra.mxu0 0.0
  %1458 = vmatprep.subr.mxu0 0.0
  %1459 = vmatpush1.msra.mxu0 0.0
  %1460 = vmatprep.subr.mxu0 0.0
  %1461 = vmatpush1.msra.mxu0 0.0
  %1462 = vmatprep.subr.mxu0 0.0
  %1463 = vmatpush1.msra.mxu0 0.0
  %1464 = vmatprep.subr.mxu0 0.0
  %1465 = vmatpush1.msra.mxu0 0.0
  %1466 = vmatprep.subr.mxu0 0.0
  %1467 = vmatpush1.msra.mxu0 0.0
  %1468 = vmatprep.subr.mxu0 0.0
  %1469 = vmatpush1.msra.mxu0 0.0
  %1470 = vmatprep.subr.mxu0 0.0
  %1471 = vmatpush1.msra.mxu0 0.0
  %1472 = vmatprep.subr.mxu0 0.0
  %1473 = vmatpush1.msra.mxu0 0.0
  %1474 = vmatprep.subr.mxu0 0.0
  %1475 = vmatpush1.msra.mxu0 0.0
  %1476 = vmatprep.subr.mxu0 0.0
  %1477 = vmatpush1.msra.mxu0 0.0
  %1478 = vmatprep.subr.mxu0 0.0
  %1479 = vmatpush1.msra.mxu0 0.0
  %1480 = vmatprep.subr.mxu0 0.0
  %1481 = vmatpush1.msra.mxu0 %v29
  %1482 = vmatprep.subr.mxu0 0.0
  %1483 = vmatpush1.msra.mxu0 %v28
  %1484 = vmatprep.subr.mxu0 0.0
  %1485 = vmatpush1.msra.mxu0 %v27
  %1486 = vmatprep.subr.mxu0 0.0
  %1487 = vmatpush1.msra.mxu0 %v26
  %1488 = vmatprep.subr.mxu0 0.0
  %1489 = vmatpush2.msra.mxu0 0.0
  %1490 = vmatprep.subr.mxu0 0.0
  %1491 = vmatpush2.msra.mxu0 0.0
  %1492 = vmatprep.subr.mxu0 0.0
  %1493 = vmatpush2.msra.mxu0 0.0
  %1494 = vmatprep.subr.mxu0 0.0
  %1495 = vmatpush2.msra.mxu0 0.0
  %1496 = vmatprep.subr.mxu0 0.0
  %1497 = vmatpush2.msra.mxu0 0.0
  %1498 = vmatprep.subr.mxu0 0.0
  %1499 = vmatpush2.msra.mxu0 0.0
  %1500 = vmatprep.subr.mxu0 0.0
  %1501 = vmatpush2.msra.mxu0 0.0
  %1502 = vmatprep.subr.mxu0 0.0
  %1503 = vmatpush2.msra.mxu0 0.0
  %1504 = vmatprep.subr.mxu0 0.0
  %1505 = vmatpush2.msra.mxu0 0.0
  %1506 = vmatprep.subr.mxu0 0.0
  %1507 = vmatpush2.msra.mxu0 0.0
  %1508 = vmatprep.subr.mxu0 0.0
  %1509 = vmatpush2.msra.mxu0 0.0
  %1510 = vmatprep.subr.mxu0 0.0
  %1511 = vmatpush2.msra.mxu0 0.0
  %1512 = vmatprep.subr.mxu0 0.0
  %1513 = vmatpush2.msra.mxu0 0.0
  %1514 = vmatprep.subr.mxu0 0.0
  %1515 = vmatpush2.msra.mxu0 0.0
  %1516 = vmatprep.subr.mxu0 0.0
  %1517 = vmatpush2.msra.mxu0 0.0
  %1518 = vmatprep.subr.mxu0 0.0
  %1519 = vmatpush2.msra.mxu0 0.0
  %1520 = vmatprep.mubr.f32.mxu0 0.0
  %1521 = vmatmul.mubr.f32.gmra.mxu0 %v1454
  %v1522 = vpop.f32.mrf.mxu0
  %v1523 = vadd.f32 0.0, %v1522
  %v1524 = vpop.f32.mrf.mxu0
  %1525 = vdwg.mxu0
  %v1527 = vrot.slane %v1523, 6
  %v1529 = vadd.f32 %v79, %v1527
  %v1530 = vxor.u32 %v1529, 2147483648
  %v1531 = vmul.f32 %v1530, 1.442695
  %v1532 = vpow.pop %v1531
  %v1533 = vadd.f32 %v1532, 1.0
  %v1534 = vrcp.pop %v1533
  %v1535 = vmul.f32 1.0, %v1534
  %v1536 = vtanh.pop %v1529
  %v1538 = vrot.slane %v1444, 6
  %v1540 = vmul.f32 %v1535, %v1538
  %1542 = vrot.lane.b32.xlu0 %v1536, 64
  %v1543 = vpop.permute.xlu0 %1542
  %v1545 = vmul.f32 %v1535, %v1543
  %1547 = vrot.lane.b32.xlu0 %v1545, 32
  %v1548 = vpop.permute.xlu0 %1547
  %v1550 = vadd.f32 %v1540, %v1548
  %v1551 = vtanh.pop %v1550
  %1553 = vrot.lane.b32.xlu0 %v1551, 64
  %v1554 = vpop.permute.xlu0 %1553
  %v1556 = vmul.f32 %v1535, %v1554
  %v1558 = vrot.slane %v1556, 2
  %1559 = vrot.lane.b32.xlu0 %v1558, 32
  %v1560 = vpop.permute.xlu0 %1559
  %v1561 = vsel %vm80, %v1560, 0
  %1563 = vmatprep.subr.mxu0 0.0
  %1564 = vmatpush1.msra.mxu0 0.0
  %1565 = vmatprep.subr.mxu0 0.0
  %1566 = vmatpush1.msra.mxu0 0.0
  %1567 = vmatprep.subr.mxu0 0.0
  %1568 = vmatpush1.msra.mxu0 0.0
  %1569 = vmatprep.subr.mxu0 0.0
  %1570 = vmatpush1.msra.mxu0 0.0
  %1571 = vmatprep.subr.mxu0 0.0
  %1572 = vmatpush1.msra.mxu0 0.0
  %1573 = vmatprep.subr.mxu0 0.0
  %1574 = vmatpush1.msra.mxu0 0.0
  %1575 = vmatprep.subr.mxu0 0.0
  %1576 = vmatpush1.msra.mxu0 0.0
  %1577 = vmatprep.subr.mxu0 0.0
  %1578 = vmatpush1.msra.mxu0 0.0
  %1579 = vmatprep.subr.mxu0 0.0
  %1580 = vmatpush1.msra.mxu0 0.0
  %1581 = vmatprep.subr.mxu0 0.0
  %1582 = vmatpush1.msra.mxu0 0.0
  %1583 = vmatprep.subr.mxu0 0.0
  %1584 = vmatpush1.msra.mxu0 0.0
  %1585 = vmatprep.subr.mxu0 0.0
  %1586 = vmatpush1.msra.mxu0 0.0
  %1587 = vmatprep.subr.mxu0 0.0
  %1588 = vmatpush1.msra.mxu0 %v29
  %1589 = vmatprep.subr.mxu0 0.0
  %1590 = vmatpush1.msra.mxu0 %v28
  %1591 = vmatprep.subr.mxu0 0.0
  %1592 = vmatpush1.msra.mxu0 %v27
  %1593 = vmatprep.subr.mxu0 0.0
  %1594 = vmatpush1.msra.mxu0 %v26
  %1595 = vmatprep.subr.mxu0 0.0
  %1596 = vmatpush2.msra.mxu0 0.0
  %1597 = vmatprep.subr.mxu0 0.0
  %1598 = vmatpush2.msra.mxu0 0.0
  %1599 = vmatprep.subr.mxu0 0.0
  %1600 = vmatpush2.msra.mxu0 0.0
  %1601 = vmatprep.subr.mxu0 0.0
  %1602 = vmatpush2.msra.mxu0 0.0
  %1603 = vmatprep.subr.mxu0 0.0
  %1604 = vmatpush2.msra.mxu0 0.0
  %1605 = vmatprep.subr.mxu0 0.0
  %1606 = vmatpush2.msra.mxu0 0.0
  %1607 = vmatprep.subr.mxu0 0.0
  %1608 = vmatpush2.msra.mxu0 0.0
  %1609 = vmatprep.subr.mxu0 0.0
  %1610 = vmatpush2.msra.mxu0 0.0
  %1611 = vmatprep.subr.mxu0 0.0
  %1612 = vmatpush2.msra.mxu0 0.0
  %1613 = vmatprep.subr.mxu0 0.0
  %1614 = vmatpush2.msra.mxu0 0.0
  %1615 = vmatprep.subr.mxu0 0.0
  %1616 = vmatpush2.msra.mxu0 0.0
  %1617 = vmatprep.subr.mxu0 0.0
  %1618 = vmatpush2.msra.mxu0 0.0
  %1619 = vmatprep.subr.mxu0 0.0
  %1620 = vmatpush2.msra.mxu0 0.0
  %1621 = vmatprep.subr.mxu0 0.0
  %1622 = vmatpush2.msra.mxu0 0.0
  %1623 = vmatprep.subr.mxu0 0.0
  %1624 = vmatpush2.msra.mxu0 0.0
  %1625 = vmatprep.subr.mxu0 0.0
  %1626 = vmatpush2.msra.mxu0 0.0
  %1627 = vmatprep.mubr.f32.mxu0 0.0
  %1628 = vmatmul.mubr.f32.gmra.mxu0 %v1561
  %v1629 = vpop.f32.mrf.mxu0
  %v1630 = vadd.f32 0.0, %v1629
  %v1631 = vpop.f32.mrf.mxu0
  %1632 = vdwg.mxu0
  %v1634 = vrot.slane %v1630, 4
  %v1636 = vadd.f32 %v79, %v1634
  %v1637 = vxor.u32 %v1636, 2147483648
  %v1638 = vmul.f32 %v1637, 1.442695
  %v1639 = vpow.pop %v1638
  %v1640 = vadd.f32 %v1639, 1.0
  %v1641 = vrcp.pop %v1640
  %v1642 = vmul.f32 1.0, %v1641
  %v1643 = vtanh.pop %v1636
  %v1645 = vrot.slane %v1550, 6
  %v1647 = vmul.f32 %v1642, %v1645
  %1649 = vrot.lane.b32.xlu0 %v1643, 64
  %v1650 = vpop.permute.xlu0 %1649
  %v1652 = vmul.f32 %v1642, %v1650
  %1654 = vrot.lane.b32.xlu0 %v1652, 32
  %v1655 = vpop.permute.xlu0 %1654
  %v1657 = vadd.f32 %v1647, %v1655
  %v1658 = vtanh.pop %v1657
  %1660 = vrot.lane.b32.xlu0 %v1658, 64
  %v1661 = vpop.permute.xlu0 %1660
  %v1663 = vmul.f32 %v1642, %v1661
  %v1665 = vrot.slane %v1663, 4
  %1666 = vrot.lane.b32.xlu0 %v1665, 32
  %v1667 = vpop.permute.xlu0 %1666
  %v1668 = vsel %vm80, %v1667, 0
  %1670 = vmatprep.subr.mxu0 0.0
  %1671 = vmatpush1.msra.mxu0 0.0
  %1672 = vmatprep.subr.mxu0 0.0
  %1673 = vmatpush1.msra.mxu0 0.0
  %1674 = vmatprep.subr.mxu0 0.0
  %1675 = vmatpush1.msra.mxu0 0.0
  %1676 = vmatprep.subr.mxu0 0.0
  %1677 = vmatpush1.msra.mxu0 0.0
  %1678 = vmatprep.subr.mxu0 0.0
  %1679 = vmatpush1.msra.mxu0 0.0
  %1680 = vmatprep.subr.mxu0 0.0
  %1681 = vmatpush1.msra.mxu0 0.0
  %1682 = vmatprep.subr.mxu0 0.0
  %1683 = vmatpush1.msra.mxu0 0.0
  %1684 = vmatprep.subr.mxu0 0.0
  %1685 = vmatpush1.msra.mxu0 0.0
  %1686 = vmatprep.subr.mxu0 0.0
  %1687 = vmatpush1.msra.mxu0 0.0
  %1688 = vmatprep.subr.mxu0 0.0
  %1689 = vmatpush1.msra.mxu0 0.0
  %1690 = vmatprep.subr.mxu0 0.0
  %1691 = vmatpush1.msra.mxu0 0.0
  %1692 = vmatprep.subr.mxu0 0.0
  %1693 = vmatpush1.msra.mxu0 0.0
  %1694 = vmatprep.subr.mxu0 0.0
  %1695 = vmatpush1.msra.mxu0 %v29
  %1696 = vmatprep.subr.mxu0 0.0
  %1697 = vmatpush1.msra.mxu0 %v28
  %1698 = vmatprep.subr.mxu0 0.0
  %1699 = vmatpush1.msra.mxu0 %v27
  %1700 = vmatprep.subr.mxu0 0.0
  %1701 = vmatpush1.msra.mxu0 %v26
  %1702 = vmatprep.subr.mxu0 0.0
  %1703 = vmatpush2.msra.mxu0 0.0
  %1704 = vmatprep.subr.mxu0 0.0
  %1705 = vmatpush2.msra.mxu0 0.0
  %1706 = vmatprep.subr.mxu0 0.0
  %1707 = vmatpush2.msra.mxu0 0.0
  %1708 = vmatprep.subr.mxu0 0.0
  %1709 = vmatpush2.msra.mxu0 0.0
  %1710 = vmatprep.subr.mxu0 0.0
  %1711 = vmatpush2.msra.mxu0 0.0
  %1712 = vmatprep.subr.mxu0 0.0
  %1713 = vmatpush2.msra.mxu0 0.0
  %1714 = vmatprep.subr.mxu0 0.0
  %1715 = vmatpush2.msra.mxu0 0.0
  %1716 = vmatprep.subr.mxu0 0.0
  %1717 = vmatpush2.msra.mxu0 0.0
  %1718 = vmatprep.subr.mxu0 0.0
  %1719 = vmatpush2.msra.mxu0 0.0
  %1720 = vmatprep.subr.mxu0 0.0
  %1721 = vmatpush2.msra.mxu0 0.0
  %1722 = vmatprep.subr.mxu0 0.0
  %1723 = vmatpush2.msra.mxu0 0.0
  %1724 = vmatprep.subr.mxu0 0.0
  %1725 = vmatpush2.msra.mxu0 0.0
  %1726 = vmatprep.subr.mxu0 0.0
  %1727 = vmatpush2.msra.mxu0 0.0
  %1728 = vmatprep.subr.mxu0 0.0
  %1729 = vmatpush2.msra.mxu0 0.0
  %1730 = vmatprep.subr.mxu0 0.0
  %1731 = vmatpush2.msra.mxu0 0.0
  %1732 = vmatprep.subr.mxu0 0.0
  %1733 = vmatpush2.msra.mxu0 0.0
  %1734 = vmatprep.mubr.f32.mxu0 0.0
  %1735 = vmatmul.mubr.f32.gmra.mxu0 %v1668
  %v1736 = vpop.f32.mrf.mxu0
  %v1737 = vadd.f32 0.0, %v1736
  %v1738 = vpop.f32.mrf.mxu0
  %1739 = vdwg.mxu0
  %v1741 = vrot.slane %v1737, 2
  %v1743 = vadd.f32 %v79, %v1741
  %v1744 = vxor.u32 %v1743, 2147483648
  %v1745 = vmul.f32 %v1744, 1.442695
  %v1746 = vpow.pop %v1745
  %v1747 = vadd.f32 %v1746, 1.0
  %v1748 = vrcp.pop %v1747
  %v1749 = vmul.f32 1.0, %v1748
  %v1750 = vtanh.pop %v1743
  %v1752 = vrot.slane %v1657, 6
  %v1754 = vmul.f32 %v1749, %v1752
  %1756 = vrot.lane.b32.xlu0 %v1750, 64
  %v1757 = vpop.permute.xlu0 %1756
  %v1759 = vmul.f32 %v1749, %v1757
  %1761 = vrot.lane.b32.xlu0 %v1759, 32
  %v1762 = vpop.permute.xlu0 %1761
  %v1764 = vadd.f32 %v1754, %v1762
  %v1765 = vtanh.pop %v1764
  %1767 = vrot.lane.b32.xlu0 %v1765, 64
  %v1768 = vpop.permute.xlu0 %1767
  %v1770 = vmul.f32 %v1749, %v1768
  %vm1771 = vcmask 1041408
  %v1772 = vsel %vm1771, %v1450, %v1556
  %vm1773 = vcmask 1043456
  %v1774 = vsel %vm1773, %v1772, %v1663
  %vm1775 = vcmask 1045504
  %v1776 = vsel %vm1775, %v1774, %v1770
  %v1778 = vlaneseq
  %v1779 = vshrl.u32 %v1778, 7
  %v1780 = vsub.s32 0, %v1779
  %v1781 = vrot.slane %v35, %v1780
  %1784 = vrot.lane.b32.xlu0 %v1776, 32
  %v1785 = vpop.permute.xlu0 %1784
  %v1786 = vsel %vm80, %v1785, 0
  %1788 = vmatprep.subr.mxu0 0.0
  %1789 = vmatpush1.msra.mxu0 0.0
  %1790 = vmatprep.subr.mxu0 0.0
  %1791 = vmatpush1.msra.mxu0 0.0
  %1792 = vmatprep.subr.mxu0 0.0
  %1793 = vmatpush1.msra.mxu0 0.0
  %1794 = vmatprep.subr.mxu0 0.0
  %1795 = vmatpush1.msra.mxu0 0.0
  %1796 = vmatprep.subr.mxu0 0.0
  %1797 = vmatpush1.msra.mxu0 0.0
  %1798 = vmatprep.subr.mxu0 0.0
  %1799 = vmatpush1.msra.mxu0 0.0
  %1800 = vmatprep.subr.mxu0 0.0
  %1801 = vmatpush1.msra.mxu0 0.0
  %1802 = vmatprep.subr.mxu0 0.0
  %1803 = vmatpush1.msra.mxu0 0.0
  %1804 = vmatprep.subr.mxu0 0.0
  %1805 = vmatpush1.msra.mxu0 0.0
  %1806 = vmatprep.subr.mxu0 0.0
  %1807 = vmatpush1.msra.mxu0 0.0
  %1808 = vmatprep.subr.mxu0 0.0
  %1809 = vmatpush1.msra.mxu0 0.0
  %1810 = vmatprep.subr.mxu0 0.0
  %1811 = vmatpush1.msra.mxu0 0.0
  %1812 = vmatprep.subr.mxu0 0.0
  %1813 = vmatpush1.msra.mxu0 %v34
  %1814 = vmatprep.subr.mxu0 0.0
  %1815 = vmatpush1.msra.mxu0 %v33
  %1816 = vmatprep.subr.mxu0 0.0
  %1817 = vmatpush1.msra.mxu0 %v32
  %1818 = vmatprep.subr.mxu0 0.0
  %1819 = vmatpush1.msra.mxu0 %v31
  %1820 = vmatprep.subr.mxu0 0.0
  %1821 = vmatpush2.msra.mxu0 0.0
  %1822 = vmatprep.subr.mxu0 0.0
  %1823 = vmatpush2.msra.mxu0 0.0
  %1824 = vmatprep.subr.mxu0 0.0
  %1825 = vmatpush2.msra.mxu0 0.0
  %1826 = vmatprep.subr.mxu0 0.0
  %1827 = vmatpush2.msra.mxu0 0.0
  %1828 = vmatprep.subr.mxu0 0.0
  %1829 = vmatpush2.msra.mxu0 0.0
  %1830 = vmatprep.subr.mxu0 0.0
  %1831 = vmatpush2.msra.mxu0 0.0
  %1832 = vmatprep.subr.mxu0 0.0
  %1833 = vmatpush2.msra.mxu0 0.0
  %1834 = vmatprep.subr.mxu0 0.0
  %1835 = vmatpush2.msra.mxu0 0.0
  %1836 = vmatprep.subr.mxu0 0.0
  %1837 = vmatpush2.msra.mxu0 0.0
  %1838 = vmatprep.subr.mxu0 0.0
  %1839 = vmatpush2.msra.mxu0 0.0
  %1840 = vmatprep.subr.mxu0 0.0
  %1841 = vmatpush2.msra.mxu0 0.0
  %1842 = vmatprep.subr.mxu0 0.0
  %1843 = vmatpush2.msra.mxu0 0.0
  %1844 = vmatprep.subr.mxu0 0.0
  %1845 = vmatpush2.msra.mxu0 0.0
  %1846 = vmatprep.subr.mxu0 0.0
  %1847 = vmatpush2.msra.mxu0 0.0
  %1848 = vmatprep.subr.mxu0 0.0
  %1849 = vmatpush2.msra.mxu0 0.0
  %1850 = vmatprep.subr.mxu0 0.0
  %1851 = vmatpush2.msra.mxu0 0.0
  %1852 = vmatprep.mubr.f32.mxu0 0.0
  %1853 = vmatmul.mubr.f32.gmra.mxu0 %v1786
  %v1854 = vpop.f32.mrf.mxu0
  %v1855 = vadd.f32 %v1781, %v1854
  %v1856 = vpop.f32.mrf.mxu0
  %1857 = vdwg.mxu0
  %vm1858 = vcmask 7168
  %1859 = vst.msk [vmem:[%s6] sm:$0xff] %vm1858, %v1855
  // Predicated region
  $region26: #{tpu_custom_call.1} parent=0 // pred_check
    _
  $region27: #{tpu_custom_call.1} parent=0 // pred_check_branch
    %1861 = sbr.rel (0) target = $region29
  $region28: #{tpu_custom_call.1} parent=0 // pred_region
    _
  $region29: #{tpu_custom_call.1} parent=0 // pred_fallthru
    _
  // Predicated region
  $region30: #{tpu_custom_call.1} parent=0 // pred_check
    _
  $region31: #{tpu_custom_call.1} parent=0 // pred_check_branch
    %1863 = sbr.rel (0) target = $region33
  $region32: #{tpu_custom_call.1} parent=0 // pred_region
    _
  $region33: #{tpu_custom_call.1} parent=0 // pred_fallthru
    _

</llo_original>
